<compile_context>
chip_gen: v5e
topology: v5e:2x2
jax: 0.10.0
libtpu: 0.0.40
codegen_flags: <defaults>
</compile_context>

<pallas_src>
import functools

import jax
import jax.numpy as jnp
import numpy as np
from jax import lax
from jax.experimental import pallas as pl
from jax.experimental.pallas import tpu as pltpu


# ---------------------------------------------------------------------------
# Fused kernel: conv(im2col matmul) + bias + ReLU + (pool folded into FC) + FC bias
# ---------------------------------------------------------------------------
def _fused_convnet_kernel(pt_ref, wc_ref, bc_ref, vf_ref, bfc_ref, o_ref):
    # pt_ref : (NB, K, S)   transposed im2col patches for this batch block
    # wc_ref : (OC, K)      flattened conv weight
    # bc_ref : (OC, 1)      conv bias (column)
    # vf_ref : (OC, S, NCp) pool folded into fc weight (classes padded to 128)
    # bfc_ref: (1, NCp)     fc bias (padded)
    # o_ref  : (NB, 1, NCp)
    wc = wc_ref[...]            # hoisted invariant loads
    bc = bc_ref[...]
    bfc = bfc_ref[...]
    nb_blk = pt_ref.shape[0]
    oc_n = wc.shape[0]

    for nb in range(nb_blk):                                   # static unroll over batch block
        # Conv as a single MXU matmul (Mosaic pads K internally), fused bias + ReLU.
        y = jnp.dot(wc, pt_ref[nb], preferred_element_type=jnp.float32)   # (OC, S)
        y = jnp.maximum(y + bc, 0.0)

        # Pool-folded FC: out[nc] = sum_{oc,s} y[oc,s] * vf[oc,s,nc] + bfc[nc]
        # OC is tiny (8): static unrolled loop of (1,S)@(S,NCp) MXU matmuls,
        # accumulated in registers.  The conv activation never leaves VMEM.
        acc = bfc                                              # (1, NCp)
        for oc in range(oc_n):
            acc = acc + jnp.dot(y[oc:oc + 1, :], vf_ref[oc],
                                preferred_element_type=jnp.float32)
        o_ref[nb] = acc


# ---------------------------------------------------------------------------
# Host-side helpers
# ---------------------------------------------------------------------------
def adaptive_pool_matrix(in_size, out_size):
    # PyTorch AdaptiveAvgPool bin rule: start = floor(i*in/out), end = ceil((i+1)*in/out)
    m = np.zeros((out_size, in_size), dtype=np.float32)
    for i in range(out_size):
        s = (i * in_size) // out_size
        e = -((-(i + 1) * in_size) // out_size)
        m[i, s:e] = 1.0 / (e - s)
    return jnp.asarray(m)


def _im2col_t(x, kh, kw):
    # x: (N, C, H, W) -> transposed patches (N, K, OH*OW), k = c*kh*kw + i*kw + j
    # (matches PyTorch's flattened Conv2d weight order).
    N, C, H, W = x.shape
    OH, OW = H - kh + 1, W - kw + 1
    cols = [x[:, :, i:i + OH, j:j + OW] for i in range(kh) for j in range(kw)]
    p = jnp.stack(cols, axis=2)                       # (N, C, kh*kw, OH, OW)
    p = p.reshape(N, C * kh * kw, OH * OW)            # (N, K, S)
    return p, OH, OW


@functools.partial(jax.jit, static_argnames=("kernel_size", "output_size"))
def simple_convnet_forward(x, wc, bc, wfc, bfc, *, kernel_size=5, output_size=(10, 10)):
    N, C, H, W = x.shape
    OC = wc.shape[0]
    NC = wfc.shape[0]
    KH = KW = kernel_size
    K = C * KH * KW
    NCP = ((NC + 127) // 128) * 128        # lane-dense output, sliced after the call

    # im2col (channel-major, transposed)
    patches_t, OH, OW = _im2col_t(x, KH, KW)                  # (N, K, S)
    S = OH * OW

    # Batch blocking: NB samples per grid step; pad N up to a multiple of NB.
    NB = N if N < 8 else 8
    G = -(-N // NB)
    NPAD = G * NB
    if NPAD != N:
        patches_t = jnp.pad(patches_t, ((0, NPAD - N), (0, 0), (0, 0)))

    wc_flat = wc.reshape(OC, K)                               # (OC, K)
    bc_col = bc.reshape(OC, 1)

    # Fold AdaptiveAvgPool2d into the FC weight (both are linear maps after the ReLU):
    # vfold[oc, oh*OW+ow, nc] = sum_{ph,pw} Wfc[nc, oc, ph, pw] * Ph[ph,oh] * Pw[pw,ow]
    ph = adaptive_pool_matrix(OH, output_size[0])             # (PH, OH)
    pw = adaptive_pool_matrix(OW, output_size[1])             # (PW, OW)
    wfc4 = wfc.reshape(NC, OC, output_size[0], output_size[1])
    vfold = jnp.einsum("ncpq,ph,qw->chwn", wfc4, ph, pw)      # (OC, OH, OW, NC)
    vfold = vfold.reshape(OC, S, NC)
    vfold = jnp.pad(vfold, ((0, 0), (0, 0), (0, NCP - NC)))   # (OC, S, NCP)
    bfc_row = jnp.pad(bfc, (0, NCP - NC)).reshape(1, NCP)

    out = pl.pallas_call(
        _fused_convnet_kernel,
        out_shape=jax.ShapeDtypeStruct((NPAD, 1, NCP), jnp.float32),
        grid=(G,),
        in_specs=[
            pl.BlockSpec((NB, K, S), lambda g: (g, 0, 0)),    # per-block patches
            pl.BlockSpec((OC, K), lambda g: (0, 0)),          # resident weights
            pl.BlockSpec((OC, 1), lambda g: (0, 0)),
            pl.BlockSpec((OC, S, NCP), lambda g: (0, 0, 0)),
            pl.BlockSpec((1, NCP), lambda g: (0, 0)),
        ],
        out_specs=pl.BlockSpec((NB, 1, NCP), lambda g: (g, 0, 0)),
        compiler_params=pltpu.CompilerParams(
            dimension_semantics=("parallel",)),               # batch splits across TCs (v7x)
    )(patches_t, wc_flat, bc_col, vfold, bfc_row)

    return out[:N, 0, :NC]


# ---------------------------------------------------------------------------
# Pure-JAX reference (matches the PyTorch module)
# ---------------------------------------------------------------------------
def reference_forward(x, wc, bc, wfc, bfc, output_size=(10, 10)):
    y = lax.conv_general_dilated(x, wc, (1, 1), "VALID",
                                 dimension_numbers=("NCHW", "OIHW", "NCHW"))
    y = jnp.maximum(y + bc[None, :, None, None], 0.0)
    ph = adaptive_pool_matrix(y.shape[2], output_size[0])
    pw = adaptive_pool_matrix(y.shape[3], output_size[1])
    p = jnp.einsum("nchw,ph,qw->ncpq", y, ph, pw)
    return p.reshape(x.shape[0], -1) @ wfc.T + bfc


if __name__ == "__main__":
    # Small shapes consistent with the module
    num_classes, feature_dim, out_channels = 3, 4, 8
    N, H, W = 2, 16, 16
    kernel_size = 5
    output_size = (10, 10)
    n_feat = out_channels * output_size[0] * output_size[1]

    key = jax.random.PRNGKey(0)
    kx, kwc, kbc, kwf, kbf = jax.random.split(key, 5)
    x = jax.random.normal(kx, (N, feature_dim, H, W), dtype=jnp.float32)
    wc = jax.random.normal(kwc, (out_channels, feature_dim, kernel_size, kernel_size),
                           dtype=jnp.float32) * 0.1
    bc = jax.random.normal(kbc, (out_channels,), dtype=jnp.float32) * 0.1
    wfc = jax.random.normal(kwf, (num_classes, n_feat), dtype=jnp.float32) * 0.05
    bfc = jax.random.normal(kbf, (num_classes,), dtype=jnp.float32) * 0.05

    out = simple_convnet_forward(x, wc, bc, wfc, bfc,
                                 kernel_size=kernel_size, output_size=output_size)
    out = jax.block_until_ready(out)

    ref = reference_forward(x, wc, bc, wfc, bfc, output_size)
    np.testing.assert_allclose(np.asarray(out), np.asarray(ref), rtol=1e-4, atol=1e-4)

    print("KERNEL_OK")
</pallas_src>

<mosaic_0001>
module attributes {stable_mosaic.version = 11 : i64} {
  func.func @_fused_convnet_kernel(%arg0: i32, %arg1: memref<2x100x144xf32, #tpu.memory_space<vmem>>, %arg2: memref<8x100xf32, #tpu.memory_space<vmem>>, %arg3: memref<8x1xf32, #tpu.memory_space<vmem>>, %arg4: memref<8x144x128xf32, #tpu.memory_space<vmem>>, %arg5: memref<1x128xf32, #tpu.memory_space<vmem>>, %arg6: memref<2x1x128xf32, #tpu.memory_space<vmem>>) attributes {dimension_semantics = [#tpu.dimension_semantics<parallel>], iteration_bounds = array<i64: 1>, scalar_prefetch = 0 : i64, scratch_operands = 0 : i64, tpu.core_type = #tpu.core_type<tc>, window_params = [{transform_indices = @transform_0, window_bounds = array<i64: 2, 100, 144>}, {pipeline_mode = #tpu.pipeline_mode<synchronous>, transform_indices = @transform_1, window_bounds = array<i64: 8, 100>}, {pipeline_mode = #tpu.pipeline_mode<synchronous>, transform_indices = @transform_2, window_bounds = array<i64: 8, 1>}, {pipeline_mode = #tpu.pipeline_mode<synchronous>, transform_indices = @transform_3, window_bounds = array<i64: 8, 144, 128>}, {pipeline_mode = #tpu.pipeline_mode<synchronous>, transform_indices = @transform_4, window_bounds = array<i64: 1, 128>}, {transform_indices = @transform_5, window_bounds = array<i64: 2, 1, 128>}]} {
    %c0 = arith.constant 0 : index
    %c0_0 = arith.constant 0 : index
    %0 = vector.load %arg2[%c0, %c0_0] : memref<8x100xf32, #tpu.memory_space<vmem>>, vector<8x100xf32>
    %c0_1 = arith.constant 0 : index
    %c0_2 = arith.constant 0 : index
    %1 = vector.load %arg3[%c0_1, %c0_2] : memref<8x1xf32, #tpu.memory_space<vmem>>, vector<8x1xf32>
    %c0_3 = arith.constant 0 : index
    %c0_4 = arith.constant 0 : index
    %2 = vector.load %arg5[%c0_3, %c0_4] : memref<1x128xf32, #tpu.memory_space<vmem>>, vector<1x128xf32>
    %c0_5 = arith.constant 0 : index
    %c0_6 = arith.constant 0 : index
    %c0_7 = arith.constant 0 : index
    %3 = vector.load %arg1[%c0_5, %c0_6, %c0_7] : memref<2x100x144xf32, #tpu.memory_space<vmem>>, vector<1x100x144xf32>
    %4 = vector.shape_cast %3 : vector<1x100x144xf32> to vector<100x144xf32>
    %cst = arith.constant dense<0.000000e+00> : vector<8x144xf32>
    %5 = tpu.matmul %0, %4, %cst {dimension_numbers = #tpu.dot_dimension_numbers<[1], [0], [0], [1], [0, 0, 1, 1], [], []>} : vector<8x100xf32>, vector<100x144xf32>, vector<8x144xf32> -> vector<8x144xf32>
    %6 = vector.broadcast %1 : vector<8x1xf32> to vector<8x144xf32>
    %7 = arith.addf %5, %6 : vector<8x144xf32>
    %cst_8 = arith.constant 0.000000e+00 : f32
    %8 = vector.broadcast %cst_8 : f32 to vector<8x144xf32>
    %9 = arith.maximumf %7, %8 : vector<8x144xf32>
    %10 = vector.extract_strided_slice %9 {offsets = [0, 0], sizes = [1, 144], strides = [1, 1]} : vector<8x144xf32> to vector<1x144xf32>
    %c0_9 = arith.constant 0 : index
    %c0_10 = arith.constant 0 : index
    %c0_11 = arith.constant 0 : index
    %11 = vector.load %arg4[%c0_9, %c0_10, %c0_11] : memref<8x144x128xf32, #tpu.memory_space<vmem>>, vector<1x144x128xf32>
    %12 = vector.shape_cast %11 : vector<1x144x128xf32> to vector<144x128xf32>
    %cst_12 = arith.constant dense<0.000000e+00> : vector<1x128xf32>
    %13 = tpu.matmul %10, %12, %cst_12 {dimension_numbers = #tpu.dot_dimension_numbers<[1], [0], [0], [1], [0, 0, 1, 1], [], []>} : vector<1x144xf32>, vector<144x128xf32>, vector<1x128xf32> -> vector<1x128xf32>
    %14 = arith.addf %2, %13 : vector<1x128xf32>
    %15 = vector.extract_strided_slice %9 {offsets = [1, 0], sizes = [1, 144], strides = [1, 1]} : vector<8x144xf32> to vector<1x144xf32>
    %c1 = arith.constant 1 : index
    %c0_13 = arith.constant 0 : index
    %c0_14 = arith.constant 0 : index
    %16 = vector.load %arg4[%c1, %c0_13, %c0_14] : memref<8x144x128xf32, #tpu.memory_space<vmem>>, vector<1x144x128xf32>
    %17 = vector.shape_cast %16 : vector<1x144x128xf32> to vector<144x128xf32>
    %cst_15 = arith.constant dense<0.000000e+00> : vector<1x128xf32>
    %18 = tpu.matmul %15, %17, %cst_15 {dimension_numbers = #tpu.dot_dimension_numbers<[1], [0], [0], [1], [0, 0, 1, 1], [], []>} : vector<1x144xf32>, vector<144x128xf32>, vector<1x128xf32> -> vector<1x128xf32>
    %19 = arith.addf %14, %18 : vector<1x128xf32>
    %20 = vector.extract_strided_slice %9 {offsets = [2, 0], sizes = [1, 144], strides = [1, 1]} : vector<8x144xf32> to vector<1x144xf32>
    %c2 = arith.constant 2 : index
    %c0_16 = arith.constant 0 : index
    %c0_17 = arith.constant 0 : index
    %21 = vector.load %arg4[%c2, %c0_16, %c0_17] : memref<8x144x128xf32, #tpu.memory_space<vmem>>, vector<1x144x128xf32>
    %22 = vector.shape_cast %21 : vector<1x144x128xf32> to vector<144x128xf32>
    %cst_18 = arith.constant dense<0.000000e+00> : vector<1x128xf32>
    %23 = tpu.matmul %20, %22, %cst_18 {dimension_numbers = #tpu.dot_dimension_numbers<[1], [0], [0], [1], [0, 0, 1, 1], [], []>} : vector<1x144xf32>, vector<144x128xf32>, vector<1x128xf32> -> vector<1x128xf32>
    %24 = arith.addf %19, %23 : vector<1x128xf32>
    %25 = vector.extract_strided_slice %9 {offsets = [3, 0], sizes = [1, 144], strides = [1, 1]} : vector<8x144xf32> to vector<1x144xf32>
    %c3 = arith.constant 3 : index
    %c0_19 = arith.constant 0 : index
    %c0_20 = arith.constant 0 : index
    %26 = vector.load %arg4[%c3, %c0_19, %c0_20] : memref<8x144x128xf32, #tpu.memory_space<vmem>>, vector<1x144x128xf32>
    %27 = vector.shape_cast %26 : vector<1x144x128xf32> to vector<144x128xf32>
    %cst_21 = arith.constant dense<0.000000e+00> : vector<1x128xf32>
    %28 = tpu.matmul %25, %27, %cst_21 {dimension_numbers = #tpu.dot_dimension_numbers<[1], [0], [0], [1], [0, 0, 1, 1], [], []>} : vector<1x144xf32>, vector<144x128xf32>, vector<1x128xf32> -> vector<1x128xf32>
    %29 = arith.addf %24, %28 : vector<1x128xf32>
    %30 = vector.extract_strided_slice %9 {offsets = [4, 0], sizes = [1, 144], strides = [1, 1]} : vector<8x144xf32> to vector<1x144xf32>
    %c4 = arith.constant 4 : index
    %c0_22 = arith.constant 0 : index
    %c0_23 = arith.constant 0 : index
    %31 = vector.load %arg4[%c4, %c0_22, %c0_23] : memref<8x144x128xf32, #tpu.memory_space<vmem>>, vector<1x144x128xf32>
    %32 = vector.shape_cast %31 : vector<1x144x128xf32> to vector<144x128xf32>
    %cst_24 = arith.constant dense<0.000000e+00> : vector<1x128xf32>
    %33 = tpu.matmul %30, %32, %cst_24 {dimension_numbers = #tpu.dot_dimension_numbers<[1], [0], [0], [1], [0, 0, 1, 1], [], []>} : vector<1x144xf32>, vector<144x128xf32>, vector<1x128xf32> -> vector<1x128xf32>
    %34 = arith.addf %29, %33 : vector<1x128xf32>
    %35 = vector.extract_strided_slice %9 {offsets = [5, 0], sizes = [1, 144], strides = [1, 1]} : vector<8x144xf32> to vector<1x144xf32>
    %c5 = arith.constant 5 : index
    %c0_25 = arith.constant 0 : index
    %c0_26 = arith.constant 0 : index
    %36 = vector.load %arg4[%c5, %c0_25, %c0_26] : memref<8x144x128xf32, #tpu.memory_space<vmem>>, vector<1x144x128xf32>
    %37 = vector.shape_cast %36 : vector<1x144x128xf32> to vector<144x128xf32>
    %cst_27 = arith.constant dense<0.000000e+00> : vector<1x128xf32>
    %38 = tpu.matmul %35, %37, %cst_27 {dimension_numbers = #tpu.dot_dimension_numbers<[1], [0], [0], [1], [0, 0, 1, 1], [], []>} : vector<1x144xf32>, vector<144x128xf32>, vector<1x128xf32> -> vector<1x128xf32>
    %39 = arith.addf %34, %38 : vector<1x128xf32>
    %40 = vector.extract_strided_slice %9 {offsets = [6, 0], sizes = [1, 144], strides = [1, 1]} : vector<8x144xf32> to vector<1x144xf32>
    %c6 = arith.constant 6 : index
    %c0_28 = arith.constant 0 : index
    %c0_29 = arith.constant 0 : index
    %41 = vector.load %arg4[%c6, %c0_28, %c0_29] : memref<8x144x128xf32, #tpu.memory_space<vmem>>, vector<1x144x128xf32>
    %42 = vector.shape_cast %41 : vector<1x144x128xf32> to vector<144x128xf32>
    %cst_30 = arith.constant dense<0.000000e+00> : vector<1x128xf32>
    %43 = tpu.matmul %40, %42, %cst_30 {dimension_numbers = #tpu.dot_dimension_numbers<[1], [0], [0], [1], [0, 0, 1, 1], [], []>} : vector<1x144xf32>, vector<144x128xf32>, vector<1x128xf32> -> vector<1x128xf32>
    %44 = arith.addf %39, %43 : vector<1x128xf32>
    %45 = vector.extract_strided_slice %9 {offsets = [7, 0], sizes = [1, 144], strides = [1, 1]} : vector<8x144xf32> to vector<1x144xf32>
    %c7 = arith.constant 7 : index
    %c0_31 = arith.constant 0 : index
    %c0_32 = arith.constant 0 : index
    %46 = vector.load %arg4[%c7, %c0_31, %c0_32] : memref<8x144x128xf32, #tpu.memory_space<vmem>>, vector<1x144x128xf32>
    %47 = vector.shape_cast %46 : vector<1x144x128xf32> to vector<144x128xf32>
    %cst_33 = arith.constant dense<0.000000e+00> : vector<1x128xf32>
    %48 = tpu.matmul %45, %47, %cst_33 {dimension_numbers = #tpu.dot_dimension_numbers<[1], [0], [0], [1], [0, 0, 1, 1], [], []>} : vector<1x144xf32>, vector<144x128xf32>, vector<1x128xf32> -> vector<1x128xf32>
    %49 = arith.addf %44, %48 : vector<1x128xf32>
    %c0_34 = arith.constant 0 : index
    %c0_35 = arith.constant 0 : index
    %c0_36 = arith.constant 0 : index
    %50 = vector.load %arg6[%c0_34, %c0_35, %c0_36] : memref<2x1x128xf32, #tpu.memory_space<vmem>>, vector<1x1x128xf32>
    %51 = vector.shape_cast %50 : vector<1x1x128xf32> to vector<1x128xf32>
    %52 = vector.shape_cast %49 : vector<1x128xf32> to vector<1x1x128xf32>
    tpu.vector_store %arg6[%c0_34, %c0_35, %c0_36], %52 {strides = array<i32>} : memref<2x1x128xf32, #tpu.memory_space<vmem>>, vector<1x1x128xf32>,
    %c1_37 = arith.constant 1 : index
    %c0_38 = arith.constant 0 : index
    %c0_39 = arith.constant 0 : index
    %53 = vector.load %arg1[%c1_37, %c0_38, %c0_39] : memref<2x100x144xf32, #tpu.memory_space<vmem>>, vector<1x100x144xf32>
    %54 = vector.shape_cast %53 : vector<1x100x144xf32> to vector<100x144xf32>
    %cst_40 = arith.constant dense<0.000000e+00> : vector<8x144xf32>
    %55 = tpu.matmul %0, %54, %cst_40 {dimension_numbers = #tpu.dot_dimension_numbers<[1], [0], [0], [1], [0, 0, 1, 1], [], []>} : vector<8x100xf32>, vector<100x144xf32>, vector<8x144xf32> -> vector<8x144xf32>
    %56 = vector.broadcast %1 : vector<8x1xf32> to vector<8x144xf32>
    %57 = arith.addf %55, %56 : vector<8x144xf32>
    %cst_41 = arith.constant 0.000000e+00 : f32
    %58 = vector.broadcast %cst_41 : f32 to vector<8x144xf32>
    %59 = arith.maximumf %57, %58 : vector<8x144xf32>
    %60 = vector.extract_strided_slice %59 {offsets = [0, 0], sizes = [1, 144], strides = [1, 1]} : vector<8x144xf32> to vector<1x144xf32>
    %c0_42 = arith.constant 0 : index
    %c0_43 = arith.constant 0 : index
    %c0_44 = arith.constant 0 : index
    %61 = vector.load %arg4[%c0_42, %c0_43, %c0_44] : memref<8x144x128xf32, #tpu.memory_space<vmem>>, vector<1x144x128xf32>
    %62 = vector.shape_cast %61 : vector<1x144x128xf32> to vector<144x128xf32>
    %cst_45 = arith.constant dense<0.000000e+00> : vector<1x128xf32>
    %63 = tpu.matmul %60, %62, %cst_45 {dimension_numbers = #tpu.dot_dimension_numbers<[1], [0], [0], [1], [0, 0, 1, 1], [], []>} : vector<1x144xf32>, vector<144x128xf32>, vector<1x128xf32> -> vector<1x128xf32>
    %64 = arith.addf %2, %63 : vector<1x128xf32>
    %65 = vector.extract_strided_slice %59 {offsets = [1, 0], sizes = [1, 144], strides = [1, 1]} : vector<8x144xf32> to vector<1x144xf32>
    %c1_46 = arith.constant 1 : index
    %c0_47 = arith.constant 0 : index
    %c0_48 = arith.constant 0 : index
    %66 = vector.load %arg4[%c1_46, %c0_47, %c0_48] : memref<8x144x128xf32, #tpu.memory_space<vmem>>, vector<1x144x128xf32>
    %67 = vector.shape_cast %66 : vector<1x144x128xf32> to vector<144x128xf32>
    %cst_49 = arith.constant dense<0.000000e+00> : vector<1x128xf32>
    %68 = tpu.matmul %65, %67, %cst_49 {dimension_numbers = #tpu.dot_dimension_numbers<[1], [0], [0], [1], [0, 0, 1, 1], [], []>} : vector<1x144xf32>, vector<144x128xf32>, vector<1x128xf32> -> vector<1x128xf32>
    %69 = arith.addf %64, %68 : vector<1x128xf32>
    %70 = vector.extract_strided_slice %59 {offsets = [2, 0], sizes = [1, 144], strides = [1, 1]} : vector<8x144xf32> to vector<1x144xf32>
    %c2_50 = arith.constant 2 : index
    %c0_51 = arith.constant 0 : index
    %c0_52 = arith.constant 0 : index
    %71 = vector.load %arg4[%c2_50, %c0_51, %c0_52] : memref<8x144x128xf32, #tpu.memory_space<vmem>>, vector<1x144x128xf32>
    %72 = vector.shape_cast %71 : vector<1x144x128xf32> to vector<144x128xf32>
    %cst_53 = arith.constant dense<0.000000e+00> : vector<1x128xf32>
    %73 = tpu.matmul %70, %72, %cst_53 {dimension_numbers = #tpu.dot_dimension_numbers<[1], [0], [0], [1], [0, 0, 1, 1], [], []>} : vector<1x144xf32>, vector<144x128xf32>, vector<1x128xf32> -> vector<1x128xf32>
    %74 = arith.addf %69, %73 : vector<1x128xf32>
    %75 = vector.extract_strided_slice %59 {offsets = [3, 0], sizes = [1, 144], strides = [1, 1]} : vector<8x144xf32> to vector<1x144xf32>
    %c3_54 = arith.constant 3 : index
    %c0_55 = arith.constant 0 : index
    %c0_56 = arith.constant 0 : index
    %76 = vector.load %arg4[%c3_54, %c0_55, %c0_56] : memref<8x144x128xf32, #tpu.memory_space<vmem>>, vector<1x144x128xf32>
    %77 = vector.shape_cast %76 : vector<1x144x128xf32> to vector<144x128xf32>
    %cst_57 = arith.constant dense<0.000000e+00> : vector<1x128xf32>
    %78 = tpu.matmul %75, %77, %cst_57 {dimension_numbers = #tpu.dot_dimension_numbers<[1], [0], [0], [1], [0, 0, 1, 1], [], []>} : vector<1x144xf32>, vector<144x128xf32>, vector<1x128xf32> -> vector<1x128xf32>
    %79 = arith.addf %74, %78 : vector<1x128xf32>
    %80 = vector.extract_strided_slice %59 {offsets = [4, 0], sizes = [1, 144], strides = [1, 1]} : vector<8x144xf32> to vector<1x144xf32>
    %c4_58 = arith.constant 4 : index
    %c0_59 = arith.constant 0 : index
    %c0_60 = arith.constant 0 : index
    %81 = vector.load %arg4[%c4_58, %c0_59, %c0_60] : memref<8x144x128xf32, #tpu.memory_space<vmem>>, vector<1x144x128xf32>
    %82 = vector.shape_cast %81 : vector<1x144x128xf32> to vector<144x128xf32>
    %cst_61 = arith.constant dense<0.000000e+00> : vector<1x128xf32>
    %83 = tpu.matmul %80, %82, %cst_61 {dimension_numbers = #tpu.dot_dimension_numbers<[1], [0], [0], [1], [0, 0, 1, 1], [], []>} : vector<1x144xf32>, vector<144x128xf32>, vector<1x128xf32> -> vector<1x128xf32>
    %84 = arith.addf %79, %83 : vector<1x128xf32>
    %85 = vector.extract_strided_slice %59 {offsets = [5, 0], sizes = [1, 144], strides = [1, 1]} : vector<8x144xf32> to vector<1x144xf32>
    %c5_62 = arith.constant 5 : index
    %c0_63 = arith.constant 0 : index
    %c0_64 = arith.constant 0 : index
    %86 = vector.load %arg4[%c5_62, %c0_63, %c0_64] : memref<8x144x128xf32, #tpu.memory_space<vmem>>, vector<1x144x128xf32>
    %87 = vector.shape_cast %86 : vector<1x144x128xf32> to vector<144x128xf32>
    %cst_65 = arith.constant dense<0.000000e+00> : vector<1x128xf32>
    %88 = tpu.matmul %85, %87, %cst_65 {dimension_numbers = #tpu.dot_dimension_numbers<[1], [0], [0], [1], [0, 0, 1, 1], [], []>} : vector<1x144xf32>, vector<144x128xf32>, vector<1x128xf32> -> vector<1x128xf32>
    %89 = arith.addf %84, %88 : vector<1x128xf32>
    %90 = vector.extract_strided_slice %59 {offsets = [6, 0], sizes = [1, 144], strides = [1, 1]} : vector<8x144xf32> to vector<1x144xf32>
    %c6_66 = arith.constant 6 : index
    %c0_67 = arith.constant 0 : index
    %c0_68 = arith.constant 0 : index
    %91 = vector.load %arg4[%c6_66, %c0_67, %c0_68] : memref<8x144x128xf32, #tpu.memory_space<vmem>>, vector<1x144x128xf32>
    %92 = vector.shape_cast %91 : vector<1x144x128xf32> to vector<144x128xf32>
    %cst_69 = arith.constant dense<0.000000e+00> : vector<1x128xf32>
    %93 = tpu.matmul %90, %92, %cst_69 {dimension_numbers = #tpu.dot_dimension_numbers<[1], [0], [0], [1], [0, 0, 1, 1], [], []>} : vector<1x144xf32>, vector<144x128xf32>, vector<1x128xf32> -> vector<1x128xf32>
    %94 = arith.addf %89, %93 : vector<1x128xf32>
    %95 = vector.extract_strided_slice %59 {offsets = [7, 0], sizes = [1, 144], strides = [1, 1]} : vector<8x144xf32> to vector<1x144xf32>
    %c7_70 = arith.constant 7 : index
    %c0_71 = arith.constant 0 : index
    %c0_72 = arith.constant 0 : index
    %96 = vector.load %arg4[%c7_70, %c0_71, %c0_72] : memref<8x144x128xf32, #tpu.memory_space<vmem>>, vector<1x144x128xf32>
    %97 = vector.shape_cast %96 : vector<1x144x128xf32> to vector<144x128xf32>
    %cst_73 = arith.constant dense<0.000000e+00> : vector<1x128xf32>
    %98 = tpu.matmul %95, %97, %cst_73 {dimension_numbers = #tpu.dot_dimension_numbers<[1], [0], [0], [1], [0, 0, 1, 1], [], []>} : vector<1x144xf32>, vector<144x128xf32>, vector<1x128xf32> -> vector<1x128xf32>
    %99 = arith.addf %94, %98 : vector<1x128xf32>
    %c1_74 = arith.constant 1 : index
    %c0_75 = arith.constant 0 : index
    %c0_76 = arith.constant 0 : index
    %100 = vector.load %arg6[%c1_74, %c0_75, %c0_76] : memref<2x1x128xf32, #tpu.memory_space<vmem>>, vector<1x1x128xf32>
    %101 = vector.shape_cast %100 : vector<1x1x128xf32> to vector<1x128xf32>
    %102 = vector.shape_cast %99 : vector<1x128xf32> to vector<1x1x128xf32>
    tpu.vector_store %arg6[%c1_74, %c0_75, %c0_76], %102 {strides = array<i32>} : memref<2x1x128xf32, #tpu.memory_space<vmem>>, vector<1x1x128xf32>,
    return
  }
  func.func @transform_0(%arg0: i32) -> (i32, i32, i32) {
    %c0_i32 = arith.constant 0 : i32
    %c0_i32_0 = arith.constant 0 : i32
    %c0_i32_1 = arith.constant 0 : i32
    return %arg0, %c0_i32, %c0_i32_0 : i32, i32, i32
  }
  func.func @transform_1(%arg0: i32) -> (i32, i32) {
    %c0_i32 = arith.constant 0 : i32
    %c0_i32_0 = arith.constant 0 : i32
    %c0_i32_1 = arith.constant 0 : i32
    return %c0_i32, %c0_i32_0 : i32, i32
  }
  func.func @transform_2(%arg0: i32) -> (i32, i32) {
    %c0_i32 = arith.constant 0 : i32
    %c0_i32_0 = arith.constant 0 : i32
    %c0_i32_1 = arith.constant 0 : i32
    return %c0_i32, %c0_i32_0 : i32, i32
  }
  func.func @transform_3(%arg0: i32) -> (i32, i32, i32) {
    %c0_i32 = arith.constant 0 : i32
    %c0_i32_0 = arith.constant 0 : i32
    %c0_i32_1 = arith.constant 0 : i32
    %c0_i32_2 = arith.constant 0 : i32
    return %c0_i32, %c0_i32_0, %c0_i32_1 : i32, i32, i32
  }
  func.func @transform_4(%arg0: i32) -> (i32, i32) {
    %c0_i32 = arith.constant 0 : i32
    %c0_i32_0 = arith.constant 0 : i32
    %c0_i32_1 = arith.constant 0 : i32
    return %c0_i32, %c0_i32_0 : i32, i32
  }
  func.func @transform_5(%arg0: i32) -> (i32, i32, i32) {
    %c0_i32 = arith.constant 0 : i32
    %c0_i32_0 = arith.constant 0 : i32
    %c0_i32_1 = arith.constant 0 : i32
    return %arg0, %c0_i32, %c0_i32_0 : i32, i32, i32
  }
}

</mosaic_0001>

<llo_original>
// kernel: simple_convnet_forward.1
$region0: #{simple_convnet_forward.1}
  #allocation0 [shape = 'u32[]', space=smem, size = 0x4, offset = 0x4, fixed_abs, tag = 'smem constant byte address 0x4 - core index']
  #allocation1 [shape = 'u32[72,128]{1,0:T(1,128)}', space=vmem, size = 0x9000, scoped, tag = 'internal scratch']
  %s0 = inlined_call_operand.vmem [shape: f32[2,100,144], index: 0, kind: input, shape index: {}]
  %s1 = inlined_call_operand.vmem [shape: f32[8,100], index: 1, kind: input, shape index: {}]
  %s2 = inlined_call_operand.vmem [shape: f32[8,1], index: 2, kind: input, shape index: {}]
  %s3 = inlined_call_operand.vmem [shape: f32[8,144,128], index: 3, kind: input, shape index: {}]
  %s4 = inlined_call_operand.vmem [shape: f32[1,128], index: 4, kind: input, shape index: {}]
  %s5 = inlined_call_operand.hbm [shape: f32[2,1,128], index: 5, kind: output, shape index: {}]
  %s6 = sld [smem:[#allocation0]]
  $region30: #{simple_convnet_forward.1} parent=0
    _
  %s8 = ssub.s32 1, %s6
  %s9 = scalar_select 0, %s8, %s6
  $region1: #{simple_convnet_forward.1} parent=0
    #allocation2 [shape = 'u8[1024]{0}', space=vmem, size = 0x400, scoped, tag = 'output window, operand 0, single buffered']
    #allocation3 [shape = 's32[1]{0}', space=sflag, size = 0x4, scoped, tag = 'scoped memory for simple_convnet_forward.1']
    %10 = vsyncpa [#allocation3], 0
    // Predicated region
    $region2: #{simple_convnet_forward.1} parent=1 // pred_check
      _
    $region3: #{simple_convnet_forward.1} parent=1 // pred_check_branch
      %12 = sbr.rel (0) target = $region5
    $region4: #{simple_convnet_forward.1} parent=1 // pred_region
      _
    $region5: #{simple_convnet_forward.1} parent=1 // pred_fallthru
      _
    // Predicated region
    $region6: #{simple_convnet_forward.1} parent=1 // pred_check
      _
    $region7: #{simple_convnet_forward.1} parent=1 // pred_check_branch
      %14 = sbr.rel (0) target = $region9
    $region8: #{simple_convnet_forward.1} parent=1 // pred_region
      _
    $region9: #{simple_convnet_forward.1} parent=1 // pred_fallthru
      _
    // Predicated region
    $region10: #{simple_convnet_forward.1} parent=1 // pred_check
      _
    $region11: #{simple_convnet_forward.1} parent=1 // pred_check_branch
      %16 = sbr.rel (0) target = $region13
    $region12: #{simple_convnet_forward.1} parent=1 // pred_region
      _
    $region13: #{simple_convnet_forward.1} parent=1 // pred_fallthru
      _
    // Predicated region
    $region14: #{simple_convnet_forward.1} parent=1 // pred_check
      _
    $region15: #{simple_convnet_forward.1} parent=1 // pred_check_branch
      %18 = sbr.rel (0) target = $region17
    $region16: #{simple_convnet_forward.1} parent=1 // pred_region
      _
    $region17: #{simple_convnet_forward.1} parent=1 // pred_fallthru
      _
    // Predicated region
    $region18: #{simple_convnet_forward.1} parent=1 // pred_check
      _
    $region19: #{simple_convnet_forward.1} parent=1 // pred_check_branch
      %20 = sbr.rel (0) target = $region21
    $region20: #{simple_convnet_forward.1} parent=1 // pred_region
      _
    $region21: #{simple_convnet_forward.1} parent=1 // pred_fallthru
      _
    %v21 = vld [vmem:[%s1] sm:$0xff]
    %v22 = vld [vmem:[%s2] sm:$0xff]
    %v23 = vld [vmem:[%s4] sm:$0x1]
    %v24 = vld [vmem:[%s0] sm:$0xff]
    %v25 = vld [vmem:[%s0 + $0x8] sm:$0xff]
    %v26 = vld [vmem:[%s0 + $0x10] sm:$0xff]
    %v27 = vld [vmem:[%s0 + $0x18] sm:$0xff]
    %v28 = vld [vmem:[%s0 + $0x20] sm:$0xff]
    %v29 = vld [vmem:[%s0 + $0x28] sm:$0xff]
    %v30 = vld [vmem:[%s0 + $0x30] sm:$0xff]
    %v31 = vld [vmem:[%s0 + $0x38] sm:$0xff]
    %v32 = vld [vmem:[%s0 + $0x40] sm:$0xff]
    %v33 = vld [vmem:[%s0 + $0x48] sm:$0xff]
    %v34 = vld [vmem:[%s0 + $0x50] sm:$0xff]
    %v35 = vld [vmem:[%s0 + $0x58] sm:$0xff]
    %v36 = vld [vmem:[%s0 + $0x60] sm:$0xff]
    %v37 = vld [vmem:[%s0 + $0x68] sm:$0xff]
    %v38 = vld [vmem:[%s0 + $0x70] sm:$0xff]
    %v39 = vld [vmem:[%s0 + $0x78] sm:$0xff]
    %v40 = vld [vmem:[%s0 + $0x80] sm:$0xff]
    %v41 = vld [vmem:[%s0 + $0x88] sm:$0xff]
    %v42 = vld [vmem:[%s0 + $0x90] sm:$0xff]
    %v43 = vld [vmem:[%s0 + $0x98] sm:$0xff]
    %v44 = vld [vmem:[%s0 + $0xa0] sm:$0xff]
    %v45 = vld [vmem:[%s0 + $0xa8] sm:$0xff]
    %v46 = vld [vmem:[%s0 + $0xb0] sm:$0xff]
    %v47 = vld [vmem:[%s0 + $0xb8] sm:$0xff]
    %v48 = vld [vmem:[%s0 + $0xc0] sm:$0xf]
    %v49 = vld [vmem:[%s0 + $0xc8] sm:$0xf]
    %51 = vset.pattern.permute.xlu0 0
    %52 = vperm.xlu0 %51, %v22
    %v53 = vpop.permute.xlu0 %52
    %vm55 = vcmask 818176
    %v57 = vsel %vm55, %v21, 0
    %vm59 = vcmask 1043456
    %v61 = vsel %vm59, %v48, 0
    %v64 = vsel %vm59, %v49, 0
    %66 = vmatpush.msra.mxu0 0.0
    %67 = vmatpush.msra.mxu0 0.0
    %68 = vmatpush.msra.mxu0 0.0
    %69 = vmatpush.msra.mxu0 %v61
    %70 = vmatpush.msra.mxu0 %v46
    %71 = vmatpush.msra.mxu0 %v44
    %72 = vmatpush.msra.mxu0 %v42
    %73 = vmatpush.msra.mxu0 %v40
    %74 = vmatpush.msra.mxu0 %v38
    %75 = vmatpush.msra.mxu0 %v36
    %76 = vmatpush.msra.mxu0 %v34
    %77 = vmatpush.msra.mxu0 %v32
    %78 = vmatpush.msra.mxu0 %v30
    %79 = vmatpush.msra.mxu0 %v28
    %80 = vmatpush.msra.mxu0 %v26
    %81 = vmatpush.msra.mxu0 %v24
    %82 = vmatmul.f32.gmra.mxu0 %v57
    %v83 = vpop.f32.mrf.mxu0
    %v84 = vadd.f32 %v53, %v83
    %85 = vdwg.mxu0
    %86 = vmatpush.msra.mxu0 0.0
    %87 = vmatpush.msra.mxu0 0.0
    %88 = vmatpush.msra.mxu0 0.0
    %89 = vmatpush.msra.mxu0 %v64
    %90 = vmatpush.msra.mxu0 %v47
    %91 = vmatpush.msra.mxu0 %v45
    %92 = vmatpush.msra.mxu0 %v43
    %93 = vmatpush.msra.mxu0 %v41
    %94 = vmatpush.msra.mxu0 %v39
    %95 = vmatpush.msra.mxu0 %v37
    %96 = vmatpush.msra.mxu0 %v35
    %97 = vmatpush.msra.mxu0 %v33
    %98 = vmatpush.msra.mxu0 %v31
    %99 = vmatpush.msra.mxu0 %v29
    %100 = vmatpush.msra.mxu0 %v27
    %101 = vmatpush.msra.mxu0 %v25
    %102 = vmatmul.f32.gmra.mxu0 %v57
    %v103 = vpop.f32.mrf.mxu0
    %v104 = vadd.f32 %v53, %v103
    %105 = vdwg.mxu0
    %v106 = vmax.f32 %v84, 0.0
    %v107 = vmax.f32 %v104, 0.0
    %v108 = vld [vmem:[%s3] sm:$0xff]
    %v109 = vld [vmem:[%s3 + $0x8] sm:$0xff]
    %v110 = vld [vmem:[%s3 + $0x10] sm:$0xff]
    %v111 = vld [vmem:[%s3 + $0x18] sm:$0xff]
    %v112 = vld [vmem:[%s3 + $0x20] sm:$0xff]
    %v113 = vld [vmem:[%s3 + $0x28] sm:$0xff]
    %v114 = vld [vmem:[%s3 + $0x30] sm:$0xff]
    %v115 = vld [vmem:[%s3 + $0x38] sm:$0xff]
    %v116 = vld [vmem:[%s3 + $0x40] sm:$0xff]
    %v117 = vld [vmem:[%s3 + $0x48] sm:$0xff]
    %v118 = vld [vmem:[%s3 + $0x50] sm:$0xff]
    %v119 = vld [vmem:[%s3 + $0x58] sm:$0xff]
    %v120 = vld [vmem:[%s3 + $0x60] sm:$0xff]
    %v121 = vld [vmem:[%s3 + $0x68] sm:$0xff]
    %v122 = vld [vmem:[%s3 + $0x70] sm:$0xff]
    %v123 = vld [vmem:[%s3 + $0x78] sm:$0xff]
    %v124 = vld [vmem:[%s3 + $0x80] sm:$0xff]
    %v125 = vld [vmem:[%s3 + $0x88] sm:$0xff]
    %vm126 = vcmask 130048
    %v128 = vsel %vm126, %v107, 0
    %130 = vmatpush.msra.mxu0 %v123
    %131 = vmatpush.msra.mxu0 %v122
    %132 = vmatpush.msra.mxu0 %v121
    %133 = vmatpush.msra.mxu0 %v120
    %134 = vmatpush.msra.mxu0 %v119
    %135 = vmatpush.msra.mxu0 %v118
    %136 = vmatpush.msra.mxu0 %v117
    %137 = vmatpush.msra.mxu0 %v116
    %138 = vmatpush.msra.mxu0 %v115
    %139 = vmatpush.msra.mxu0 %v114
    %140 = vmatpush.msra.mxu0 %v113
    %141 = vmatpush.msra.mxu0 %v112
    %142 = vmatpush.msra.mxu0 %v111
    %143 = vmatpush.msra.mxu0 %v110
    %144 = vmatpush.msra.mxu0 %v109
    %145 = vmatpush.msra.mxu0 %v108
    %146 = vmatmul.f32.gmra.mxu0 %v106
    %v147 = vpop.f32.mrf.mxu0
    %v148 = vadd.f32 0.0, %v147
    %149 = vdwg.mxu0
    %150 = vmatpush.msra.mxu0 0.0
    %151 = vmatpush.msra.mxu0 0.0
    %152 = vmatpush.msra.mxu0 0.0
    %153 = vmatpush.msra.mxu0 0.0
    %154 = vmatpush.msra.mxu0 0.0
    %155 = vmatpush.msra.mxu0 0.0
    %156 = vmatpush.msra.mxu0 0.0
    %157 = vmatpush.msra.mxu0 0.0
    %158 = vmatpush.msra.mxu0 0.0
    %159 = vmatpush.msra.mxu0 0.0
    %160 = vmatpush.msra.mxu0 0.0
    %161 = vmatpush.msra.mxu0 0.0
    %162 = vmatpush.msra.mxu0 0.0
    %163 = vmatpush.msra.mxu0 0.0
    %164 = vmatpush.msra.mxu0 %v125
    %165 = vmatpush.msra.mxu0 %v124
    %166 = vmatmul.f32.gmra.mxu0 %v128
    %v167 = vpop.f32.mrf.mxu0
    %v168 = vadd.f32 %v148, %v167
    %169 = vdwg.mxu0
    %v170 = vadd.f32 %v23, %v168
    %s171 = scalar_lea.vmem %s3, 144
    %v172 = vld [vmem:[%s171] sm:$0xff]
    %v173 = vld [vmem:[%s171 + $0x8] sm:$0xff]
    %v174 = vld [vmem:[%s171 + $0x10] sm:$0xff]
    %v175 = vld [vmem:[%s171 + $0x18] sm:$0xff]
    %v176 = vld [vmem:[%s171 + $0x20] sm:$0xff]
    %v177 = vld [vmem:[%s171 + $0x28] sm:$0xff]
    %v178 = vld [vmem:[%s171 + $0x30] sm:$0xff]
    %v179 = vld [vmem:[%s171 + $0x38] sm:$0xff]
    %v180 = vld [vmem:[%s171 + $0x40] sm:$0xff]
    %v181 = vld [vmem:[%s171 + $0x48] sm:$0xff]
    %v182 = vld [vmem:[%s171 + $0x50] sm:$0xff]
    %v183 = vld [vmem:[%s171 + $0x58] sm:$0xff]
    %v184 = vld [vmem:[%s171 + $0x60] sm:$0xff]
    %v185 = vld [vmem:[%s171 + $0x68] sm:$0xff]
    %v186 = vld [vmem:[%s171 + $0x70] sm:$0xff]
    %v187 = vld [vmem:[%s171 + $0x78] sm:$0xff]
    %v188 = vld [vmem:[%s171 + $0x80] sm:$0xff]
    %v189 = vld [vmem:[%s171 + $0x88] sm:$0xff]
    %v191 = vrot.slane %v106, 1
    %v192 = vrot.slane %v107, 1
    %v194 = vsel %vm126, %v192, 0
    %196 = vmatpush.msra.mxu0 %v187
    %197 = vmatpush.msra.mxu0 %v186
    %198 = vmatpush.msra.mxu0 %v185
    %199 = vmatpush.msra.mxu0 %v184
    %200 = vmatpush.msra.mxu0 %v183
    %201 = vmatpush.msra.mxu0 %v182
    %202 = vmatpush.msra.mxu0 %v181
    %203 = vmatpush.msra.mxu0 %v180
    %204 = vmatpush.msra.mxu0 %v179
    %205 = vmatpush.msra.mxu0 %v178
    %206 = vmatpush.msra.mxu0 %v177
    %207 = vmatpush.msra.mxu0 %v176
    %208 = vmatpush.msra.mxu0 %v175
    %209 = vmatpush.msra.mxu0 %v174
    %210 = vmatpush.msra.mxu0 %v173
    %211 = vmatpush.msra.mxu0 %v172
    %212 = vmatmul.f32.gmra.mxu0 %v191
    %v213 = vpop.f32.mrf.mxu0
    %v214 = vadd.f32 0.0, %v213
    %215 = vdwg.mxu0
    %216 = vmatpush.msra.mxu0 0.0
    %217 = vmatpush.msra.mxu0 0.0
    %218 = vmatpush.msra.mxu0 0.0
    %219 = vmatpush.msra.mxu0 0.0
    %220 = vmatpush.msra.mxu0 0.0
    %221 = vmatpush.msra.mxu0 0.0
    %222 = vmatpush.msra.mxu0 0.0
    %223 = vmatpush.msra.mxu0 0.0
    %224 = vmatpush.msra.mxu0 0.0
    %225 = vmatpush.msra.mxu0 0.0
    %226 = vmatpush.msra.mxu0 0.0
    %227 = vmatpush.msra.mxu0 0.0
    %228 = vmatpush.msra.mxu0 0.0
    %229 = vmatpush.msra.mxu0 0.0
    %230 = vmatpush.msra.mxu0 %v189
    %231 = vmatpush.msra.mxu0 %v188
    %232 = vmatmul.f32.gmra.mxu0 %v194
    %v233 = vpop.f32.mrf.mxu0
    %v234 = vadd.f32 %v214, %v233
    %235 = vdwg.mxu0
    %v236 = vadd.f32 %v170, %v234
    %s237 = scalar_lea.vmem %s3, 288
    %v238 = vld [vmem:[%s237] sm:$0xff]
    %v239 = vld [vmem:[%s237 + $0x8] sm:$0xff]
    %v240 = vld [vmem:[%s237 + $0x10] sm:$0xff]
    %v241 = vld [vmem:[%s237 + $0x18] sm:$0xff]
    %v242 = vld [vmem:[%s237 + $0x20] sm:$0xff]
    %v243 = vld [vmem:[%s237 + $0x28] sm:$0xff]
    %v244 = vld [vmem:[%s237 + $0x30] sm:$0xff]
    %v245 = vld [vmem:[%s237 + $0x38] sm:$0xff]
    %v246 = vld [vmem:[%s237 + $0x40] sm:$0xff]
    %v247 = vld [vmem:[%s237 + $0x48] sm:$0xff]
    %v248 = vld [vmem:[%s237 + $0x50] sm:$0xff]
    %v249 = vld [vmem:[%s237 + $0x58] sm:$0xff]
    %v250 = vld [vmem:[%s237 + $0x60] sm:$0xff]
    %v251 = vld [vmem:[%s237 + $0x68] sm:$0xff]
    %v252 = vld [vmem:[%s237 + $0x70] sm:$0xff]
    %v253 = vld [vmem:[%s237 + $0x78] sm:$0xff]
    %v254 = vld [vmem:[%s237 + $0x80] sm:$0xff]
    %v255 = vld [vmem:[%s237 + $0x88] sm:$0xff]
    %v256 = vrot.slane %v106, 2
    %v257 = vrot.slane %v107, 2
    %v259 = vsel %vm126, %v257, 0
    %261 = vmatpush.msra.mxu0 %v253
    %262 = vmatpush.msra.mxu0 %v252
    %263 = vmatpush.msra.mxu0 %v251
    %264 = vmatpush.msra.mxu0 %v250
    %265 = vmatpush.msra.mxu0 %v249
    %266 = vmatpush.msra.mxu0 %v248
    %267 = vmatpush.msra.mxu0 %v247
    %268 = vmatpush.msra.mxu0 %v246
    %269 = vmatpush.msra.mxu0 %v245
    %270 = vmatpush.msra.mxu0 %v244
    %271 = vmatpush.msra.mxu0 %v243
    %272 = vmatpush.msra.mxu0 %v242
    %273 = vmatpush.msra.mxu0 %v241
    %274 = vmatpush.msra.mxu0 %v240
    %275 = vmatpush.msra.mxu0 %v239
    %276 = vmatpush.msra.mxu0 %v238
    %277 = vmatmul.f32.gmra.mxu0 %v256
    %v278 = vpop.f32.mrf.mxu0
    %v279 = vadd.f32 0.0, %v278
    %280 = vdwg.mxu0
    %281 = vmatpush.msra.mxu0 0.0
    %282 = vmatpush.msra.mxu0 0.0
    %283 = vmatpush.msra.mxu0 0.0
    %284 = vmatpush.msra.mxu0 0.0
    %285 = vmatpush.msra.mxu0 0.0
    %286 = vmatpush.msra.mxu0 0.0
    %287 = vmatpush.msra.mxu0 0.0
    %288 = vmatpush.msra.mxu0 0.0
    %289 = vmatpush.msra.mxu0 0.0
    %290 = vmatpush.msra.mxu0 0.0
    %291 = vmatpush.msra.mxu0 0.0
    %292 = vmatpush.msra.mxu0 0.0
    %293 = vmatpush.msra.mxu0 0.0
    %294 = vmatpush.msra.mxu0 0.0
    %295 = vmatpush.msra.mxu0 %v255
    %296 = vmatpush.msra.mxu0 %v254
    %297 = vmatmul.f32.gmra.mxu0 %v259
    %v298 = vpop.f32.mrf.mxu0
    %v299 = vadd.f32 %v279, %v298
    %300 = vdwg.mxu0
    %v301 = vadd.f32 %v236, %v299
    %s302 = scalar_lea.vmem %s3, 432
    %v303 = vld [vmem:[%s302] sm:$0xff]
    %v304 = vld [vmem:[%s302 + $0x8] sm:$0xff]
    %v305 = vld [vmem:[%s302 + $0x10] sm:$0xff]
    %v306 = vld [vmem:[%s302 + $0x18] sm:$0xff]
    %v307 = vld [vmem:[%s302 + $0x20] sm:$0xff]
    %v308 = vld [vmem:[%s302 + $0x28] sm:$0xff]
    %v309 = vld [vmem:[%s302 + $0x30] sm:$0xff]
    %v310 = vld [vmem:[%s302 + $0x38] sm:$0xff]
    %v311 = vld [vmem:[%s302 + $0x40] sm:$0xff]
    %v312 = vld [vmem:[%s302 + $0x48] sm:$0xff]
    %v313 = vld [vmem:[%s302 + $0x50] sm:$0xff]
    %v314 = vld [vmem:[%s302 + $0x58] sm:$0xff]
    %v315 = vld [vmem:[%s302 + $0x60] sm:$0xff]
    %v316 = vld [vmem:[%s302 + $0x68] sm:$0xff]
    %v317 = vld [vmem:[%s302 + $0x70] sm:$0xff]
    %v318 = vld [vmem:[%s302 + $0x78] sm:$0xff]
    %v319 = vld [vmem:[%s302 + $0x80] sm:$0xff]
    %v320 = vld [vmem:[%s302 + $0x88] sm:$0xff]
    %v321 = vrot.slane %v106, 3
    %v322 = vrot.slane %v107, 3
    %v324 = vsel %vm126, %v322, 0
    %326 = vmatpush.msra.mxu0 %v318
    %327 = vmatpush.msra.mxu0 %v317
    %328 = vmatpush.msra.mxu0 %v316
    %329 = vmatpush.msra.mxu0 %v315
    %330 = vmatpush.msra.mxu0 %v314
    %331 = vmatpush.msra.mxu0 %v313
    %332 = vmatpush.msra.mxu0 %v312
    %333 = vmatpush.msra.mxu0 %v311
    %334 = vmatpush.msra.mxu0 %v310
    %335 = vmatpush.msra.mxu0 %v309
    %336 = vmatpush.msra.mxu0 %v308
    %337 = vmatpush.msra.mxu0 %v307
    %338 = vmatpush.msra.mxu0 %v306
    %339 = vmatpush.msra.mxu0 %v305
    %340 = vmatpush.msra.mxu0 %v304
    %341 = vmatpush.msra.mxu0 %v303
    %342 = vmatmul.f32.gmra.mxu0 %v321
    %v343 = vpop.f32.mrf.mxu0
    %v344 = vadd.f32 0.0, %v343
    %345 = vdwg.mxu0
    %346 = vmatpush.msra.mxu0 0.0
    %347 = vmatpush.msra.mxu0 0.0
    %348 = vmatpush.msra.mxu0 0.0
    %349 = vmatpush.msra.mxu0 0.0
    %350 = vmatpush.msra.mxu0 0.0
    %351 = vmatpush.msra.mxu0 0.0
    %352 = vmatpush.msra.mxu0 0.0
    %353 = vmatpush.msra.mxu0 0.0
    %354 = vmatpush.msra.mxu0 0.0
    %355 = vmatpush.msra.mxu0 0.0
    %356 = vmatpush.msra.mxu0 0.0
    %357 = vmatpush.msra.mxu0 0.0
    %358 = vmatpush.msra.mxu0 0.0
    %359 = vmatpush.msra.mxu0 0.0
    %360 = vmatpush.msra.mxu0 %v320
    %361 = vmatpush.msra.mxu0 %v319
    %362 = vmatmul.f32.gmra.mxu0 %v324
    %v363 = vpop.f32.mrf.mxu0
    %v364 = vadd.f32 %v344, %v363
    %365 = vdwg.mxu0
    %v366 = vadd.f32 %v301, %v364
    %s367 = scalar_lea.vmem %s3, 576
    %v368 = vld [vmem:[%s367] sm:$0xff]
    %v369 = vld [vmem:[%s367 + $0x8] sm:$0xff]
    %v370 = vld [vmem:[%s367 + $0x10] sm:$0xff]
    %v371 = vld [vmem:[%s367 + $0x18] sm:$0xff]
    %v372 = vld [vmem:[%s367 + $0x20] sm:$0xff]
    %v373 = vld [vmem:[%s367 + $0x28] sm:$0xff]
    %v374 = vld [vmem:[%s367 + $0x30] sm:$0xff]
    %v375 = vld [vmem:[%s367 + $0x38] sm:$0xff]
    %v376 = vld [vmem:[%s367 + $0x40] sm:$0xff]
    %v377 = vld [vmem:[%s367 + $0x48] sm:$0xff]
    %v378 = vld [vmem:[%s367 + $0x50] sm:$0xff]
    %v379 = vld [vmem:[%s367 + $0x58] sm:$0xff]
    %v380 = vld [vmem:[%s367 + $0x60] sm:$0xff]
    %v381 = vld [vmem:[%s367 + $0x68] sm:$0xff]
    %v382 = vld [vmem:[%s367 + $0x70] sm:$0xff]
    %v383 = vld [vmem:[%s367 + $0x78] sm:$0xff]
    %v384 = vld [vmem:[%s367 + $0x80] sm:$0xff]
    %v385 = vld [vmem:[%s367 + $0x88] sm:$0xff]
    %v386 = vrot.slane %v106, 4
    %v387 = vrot.slane %v107, 4
    %v389 = vsel %vm126, %v387, 0
    %391 = vmatpush.msra.mxu0 %v383
    %392 = vmatpush.msra.mxu0 %v382
    %393 = vmatpush.msra.mxu0 %v381
    %394 = vmatpush.msra.mxu0 %v380
    %395 = vmatpush.msra.mxu0 %v379
    %396 = vmatpush.msra.mxu0 %v378
    %397 = vmatpush.msra.mxu0 %v377
    %398 = vmatpush.msra.mxu0 %v376
    %399 = vmatpush.msra.mxu0 %v375
    %400 = vmatpush.msra.mxu0 %v374
    %401 = vmatpush.msra.mxu0 %v373
    %402 = vmatpush.msra.mxu0 %v372
    %403 = vmatpush.msra.mxu0 %v371
    %404 = vmatpush.msra.mxu0 %v370
    %405 = vmatpush.msra.mxu0 %v369
    %406 = vmatpush.msra.mxu0 %v368
    %407 = vmatmul.f32.gmra.mxu0 %v386
    %v408 = vpop.f32.mrf.mxu0
    %v409 = vadd.f32 0.0, %v408
    %410 = vdwg.mxu0
    %411 = vmatpush.msra.mxu0 0.0
    %412 = vmatpush.msra.mxu0 0.0
    %413 = vmatpush.msra.mxu0 0.0
    %414 = vmatpush.msra.mxu0 0.0
    %415 = vmatpush.msra.mxu0 0.0
    %416 = vmatpush.msra.mxu0 0.0
    %417 = vmatpush.msra.mxu0 0.0
    %418 = vmatpush.msra.mxu0 0.0
    %419 = vmatpush.msra.mxu0 0.0
    %420 = vmatpush.msra.mxu0 0.0
    %421 = vmatpush.msra.mxu0 0.0
    %422 = vmatpush.msra.mxu0 0.0
    %423 = vmatpush.msra.mxu0 0.0
    %424 = vmatpush.msra.mxu0 0.0
    %425 = vmatpush.msra.mxu0 %v385
    %426 = vmatpush.msra.mxu0 %v384
    %427 = vmatmul.f32.gmra.mxu0 %v389
    %v428 = vpop.f32.mrf.mxu0
    %v429 = vadd.f32 %v409, %v428
    %430 = vdwg.mxu0
    %v431 = vadd.f32 %v366, %v429
    %s432 = scalar_lea.vmem %s3, 720
    %v433 = vld [vmem:[%s432] sm:$0xff]
    %v434 = vld [vmem:[%s432 + $0x8] sm:$0xff]
    %v435 = vld [vmem:[%s432 + $0x10] sm:$0xff]
    %v436 = vld [vmem:[%s432 + $0x18] sm:$0xff]
    %v437 = vld [vmem:[%s432 + $0x20] sm:$0xff]
    %v438 = vld [vmem:[%s432 + $0x28] sm:$0xff]
    %v439 = vld [vmem:[%s432 + $0x30] sm:$0xff]
    %v440 = vld [vmem:[%s432 + $0x38] sm:$0xff]
    %v441 = vld [vmem:[%s432 + $0x40] sm:$0xff]
    %v442 = vld [vmem:[%s432 + $0x48] sm:$0xff]
    %v443 = vld [vmem:[%s432 + $0x50] sm:$0xff]
    %v444 = vld [vmem:[%s432 + $0x58] sm:$0xff]
    %v445 = vld [vmem:[%s432 + $0x60] sm:$0xff]
    %v446 = vld [vmem:[%s432 + $0x68] sm:$0xff]
    %v447 = vld [vmem:[%s432 + $0x70] sm:$0xff]
    %v448 = vld [vmem:[%s432 + $0x78] sm:$0xff]
    %v449 = vld [vmem:[%s432 + $0x80] sm:$0xff]
    %v450 = vld [vmem:[%s432 + $0x88] sm:$0xff]
    %v451 = vrot.slane %v106, 5
    %v452 = vrot.slane %v107, 5
    %v454 = vsel %vm126, %v452, 0
    %456 = vmatpush.msra.mxu0 %v448
    %457 = vmatpush.msra.mxu0 %v447
    %458 = vmatpush.msra.mxu0 %v446
    %459 = vmatpush.msra.mxu0 %v445
    %460 = vmatpush.msra.mxu0 %v444
    %461 = vmatpush.msra.mxu0 %v443
    %462 = vmatpush.msra.mxu0 %v442
    %463 = vmatpush.msra.mxu0 %v441
    %464 = vmatpush.msra.mxu0 %v440
    %465 = vmatpush.msra.mxu0 %v439
    %466 = vmatpush.msra.mxu0 %v438
    %467 = vmatpush.msra.mxu0 %v437
    %468 = vmatpush.msra.mxu0 %v436
    %469 = vmatpush.msra.mxu0 %v435
    %470 = vmatpush.msra.mxu0 %v434
    %471 = vmatpush.msra.mxu0 %v433
    %472 = vmatmul.f32.gmra.mxu0 %v451
    %v473 = vpop.f32.mrf.mxu0
    %v474 = vadd.f32 0.0, %v473
    %475 = vdwg.mxu0
    %476 = vmatpush.msra.mxu0 0.0
    %477 = vmatpush.msra.mxu0 0.0
    %478 = vmatpush.msra.mxu0 0.0
    %479 = vmatpush.msra.mxu0 0.0
    %480 = vmatpush.msra.mxu0 0.0
    %481 = vmatpush.msra.mxu0 0.0
    %482 = vmatpush.msra.mxu0 0.0
    %483 = vmatpush.msra.mxu0 0.0
    %484 = vmatpush.msra.mxu0 0.0
    %485 = vmatpush.msra.mxu0 0.0
    %486 = vmatpush.msra.mxu0 0.0
    %487 = vmatpush.msra.mxu0 0.0
    %488 = vmatpush.msra.mxu0 0.0
    %489 = vmatpush.msra.mxu0 0.0
    %490 = vmatpush.msra.mxu0 %v450
    %491 = vmatpush.msra.mxu0 %v449
    %492 = vmatmul.f32.gmra.mxu0 %v454
    %v493 = vpop.f32.mrf.mxu0
    %v494 = vadd.f32 %v474, %v493
    %495 = vdwg.mxu0
    %v496 = vadd.f32 %v431, %v494
    %s497 = scalar_lea.vmem %s3, 864
    %v498 = vld [vmem:[%s497] sm:$0xff]
    %v499 = vld [vmem:[%s497 + $0x8] sm:$0xff]
    %v500 = vld [vmem:[%s497 + $0x10] sm:$0xff]
    %v501 = vld [vmem:[%s497 + $0x18] sm:$0xff]
    %v502 = vld [vmem:[%s497 + $0x20] sm:$0xff]
    %v503 = vld [vmem:[%s497 + $0x28] sm:$0xff]
    %v504 = vld [vmem:[%s497 + $0x30] sm:$0xff]
    %v505 = vld [vmem:[%s497 + $0x38] sm:$0xff]
    %v506 = vld [vmem:[%s497 + $0x40] sm:$0xff]
    %v507 = vld [vmem:[%s497 + $0x48] sm:$0xff]
    %v508 = vld [vmem:[%s497 + $0x50] sm:$0xff]
    %v509 = vld [vmem:[%s497 + $0x58] sm:$0xff]
    %v510 = vld [vmem:[%s497 + $0x60] sm:$0xff]
    %v511 = vld [vmem:[%s497 + $0x68] sm:$0xff]
    %v512 = vld [vmem:[%s497 + $0x70] sm:$0xff]
    %v513 = vld [vmem:[%s497 + $0x78] sm:$0xff]
    %v514 = vld [vmem:[%s497 + $0x80] sm:$0xff]
    %v515 = vld [vmem:[%s497 + $0x88] sm:$0xff]
    %v516 = vrot.slane %v106, 6
    %v517 = vrot.slane %v107, 6
    %v519 = vsel %vm126, %v517, 0
    %521 = vmatpush.msra.mxu0 %v513
    %522 = vmatpush.msra.mxu0 %v512
    %523 = vmatpush.msra.mxu0 %v511
    %524 = vmatpush.msra.mxu0 %v510
    %525 = vmatpush.msra.mxu0 %v509
    %526 = vmatpush.msra.mxu0 %v508
    %527 = vmatpush.msra.mxu0 %v507
    %528 = vmatpush.msra.mxu0 %v506
    %529 = vmatpush.msra.mxu0 %v505
    %530 = vmatpush.msra.mxu0 %v504
    %531 = vmatpush.msra.mxu0 %v503
    %532 = vmatpush.msra.mxu0 %v502
    %533 = vmatpush.msra.mxu0 %v501
    %534 = vmatpush.msra.mxu0 %v500
    %535 = vmatpush.msra.mxu0 %v499
    %536 = vmatpush.msra.mxu0 %v498
    %537 = vmatmul.f32.gmra.mxu0 %v516
    %v538 = vpop.f32.mrf.mxu0
    %v539 = vadd.f32 0.0, %v538
    %540 = vdwg.mxu0
    %541 = vmatpush.msra.mxu0 0.0
    %542 = vmatpush.msra.mxu0 0.0
    %543 = vmatpush.msra.mxu0 0.0
    %544 = vmatpush.msra.mxu0 0.0
    %545 = vmatpush.msra.mxu0 0.0
    %546 = vmatpush.msra.mxu0 0.0
    %547 = vmatpush.msra.mxu0 0.0
    %548 = vmatpush.msra.mxu0 0.0
    %549 = vmatpush.msra.mxu0 0.0
    %550 = vmatpush.msra.mxu0 0.0
    %551 = vmatpush.msra.mxu0 0.0
    %552 = vmatpush.msra.mxu0 0.0
    %553 = vmatpush.msra.mxu0 0.0
    %554 = vmatpush.msra.mxu0 0.0
    %555 = vmatpush.msra.mxu0 %v515
    %556 = vmatpush.msra.mxu0 %v514
    %557 = vmatmul.f32.gmra.mxu0 %v519
    %v558 = vpop.f32.mrf.mxu0
    %v559 = vadd.f32 %v539, %v558
    %560 = vdwg.mxu0
    %v561 = vadd.f32 %v496, %v559
    %s562 = scalar_lea.vmem %s3, 1008
    %v563 = vld [vmem:[%s562] sm:$0xff]
    %v564 = vld [vmem:[%s562 + $0x8] sm:$0xff]
    %v565 = vld [vmem:[%s562 + $0x10] sm:$0xff]
    %v566 = vld [vmem:[%s562 + $0x18] sm:$0xff]
    %v567 = vld [vmem:[%s562 + $0x20] sm:$0xff]
    %v568 = vld [vmem:[%s562 + $0x28] sm:$0xff]
    %v569 = vld [vmem:[%s562 + $0x30] sm:$0xff]
    %v570 = vld [vmem:[%s562 + $0x38] sm:$0xff]
    %v571 = vld [vmem:[%s562 + $0x40] sm:$0xff]
    %v572 = vld [vmem:[%s562 + $0x48] sm:$0xff]
    %v573 = vld [vmem:[%s562 + $0x50] sm:$0xff]
    %v574 = vld [vmem:[%s562 + $0x58] sm:$0xff]
    %v575 = vld [vmem:[%s562 + $0x60] sm:$0xff]
    %v576 = vld [vmem:[%s562 + $0x68] sm:$0xff]
    %v577 = vld [vmem:[%s562 + $0x70] sm:$0xff]
    %v578 = vld [vmem:[%s562 + $0x78] sm:$0xff]
    %v579 = vld [vmem:[%s562 + $0x80] sm:$0xff]
    %v580 = vld [vmem:[%s562 + $0x88] sm:$0xff]
    %v581 = vrot.slane %v106, 7
    %v582 = vrot.slane %v107, 7
    %v584 = vsel %vm126, %v582, 0
    %586 = vmatpush.msra.mxu0 %v578
    %587 = vmatpush.msra.mxu0 %v577
    %588 = vmatpush.msra.mxu0 %v576
    %589 = vmatpush.msra.mxu0 %v575
    %590 = vmatpush.msra.mxu0 %v574
    %591 = vmatpush.msra.mxu0 %v573
    %592 = vmatpush.msra.mxu0 %v572
    %593 = vmatpush.msra.mxu0 %v571
    %594 = vmatpush.msra.mxu0 %v570
    %595 = vmatpush.msra.mxu0 %v569
    %596 = vmatpush.msra.mxu0 %v568
    %597 = vmatpush.msra.mxu0 %v567
    %598 = vmatpush.msra.mxu0 %v566
    %599 = vmatpush.msra.mxu0 %v565
    %600 = vmatpush.msra.mxu0 %v564
    %601 = vmatpush.msra.mxu0 %v563
    %602 = vmatmul.f32.gmra.mxu0 %v581
    %v603 = vpop.f32.mrf.mxu0
    %v604 = vadd.f32 0.0, %v603
    %605 = vdwg.mxu0
    %606 = vmatpush.msra.mxu0 0.0
    %607 = vmatpush.msra.mxu0 0.0
    %608 = vmatpush.msra.mxu0 0.0
    %609 = vmatpush.msra.mxu0 0.0
    %610 = vmatpush.msra.mxu0 0.0
    %611 = vmatpush.msra.mxu0 0.0
    %612 = vmatpush.msra.mxu0 0.0
    %613 = vmatpush.msra.mxu0 0.0
    %614 = vmatpush.msra.mxu0 0.0
    %615 = vmatpush.msra.mxu0 0.0
    %616 = vmatpush.msra.mxu0 0.0
    %617 = vmatpush.msra.mxu0 0.0
    %618 = vmatpush.msra.mxu0 0.0
    %619 = vmatpush.msra.mxu0 0.0
    %620 = vmatpush.msra.mxu0 %v580
    %621 = vmatpush.msra.mxu0 %v579
    %622 = vmatmul.f32.gmra.mxu0 %v584
    %v623 = vpop.f32.mrf.mxu0
    %v624 = vadd.f32 %v604, %v623
    %625 = vdwg.mxu0
    %v626 = vadd.f32 %v561, %v624
    %627 = vst [vmem:[#allocation2] sm:$0x1] %v626
    %s628 = scalar_lea.vmem %s0, 208
    %v629 = vld [vmem:[%s628] sm:$0xff]
    %v630 = vld [vmem:[%s628 + $0x8] sm:$0xff]
    %v631 = vld [vmem:[%s628 + $0x10] sm:$0xff]
    %v632 = vld [vmem:[%s628 + $0x18] sm:$0xff]
    %v633 = vld [vmem:[%s628 + $0x20] sm:$0xff]
    %v634 = vld [vmem:[%s628 + $0x28] sm:$0xff]
    %v635 = vld [vmem:[%s628 + $0x30] sm:$0xff]
    %v636 = vld [vmem:[%s628 + $0x38] sm:$0xff]
    %v637 = vld [vmem:[%s628 + $0x40] sm:$0xff]
    %v638 = vld [vmem:[%s628 + $0x48] sm:$0xff]
    %v639 = vld [vmem:[%s628 + $0x50] sm:$0xff]
    %v640 = vld [vmem:[%s628 + $0x58] sm:$0xff]
    %v641 = vld [vmem:[%s628 + $0x60] sm:$0xff]
    %v642 = vld [vmem:[%s628 + $0x68] sm:$0xff]
    %v643 = vld [vmem:[%s628 + $0x70] sm:$0xff]
    %v644 = vld [vmem:[%s628 + $0x78] sm:$0xff]
    %v645 = vld [vmem:[%s628 + $0x80] sm:$0xff]
    %v646 = vld [vmem:[%s628 + $0x88] sm:$0xff]
    %v647 = vld [vmem:[%s628 + $0x90] sm:$0xff]
    %v648 = vld [vmem:[%s628 + $0x98] sm:$0xff]
    %v649 = vld [vmem:[%s628 + $0xa0] sm:$0xff]
    %v650 = vld [vmem:[%s628 + $0xa8] sm:$0xff]
    %v651 = vld [vmem:[%s628 + $0xb0] sm:$0xff]
    %v652 = vld [vmem:[%s628 + $0xb8] sm:$0xff]
    %v653 = vld [vmem:[%s628 + $0xc0] sm:$0xf]
    %v654 = vld [vmem:[%s628 + $0xc8] sm:$0xf]
    %v656 = vsel %vm59, %v653, 0
    %v659 = vsel %vm59, %v654, 0
    %661 = vmatpush.msra.mxu0 0.0
    %662 = vmatpush.msra.mxu0 0.0
    %663 = vmatpush.msra.mxu0 0.0
    %664 = vmatpush.msra.mxu0 %v656
    %665 = vmatpush.msra.mxu0 %v651
    %666 = vmatpush.msra.mxu0 %v649
    %667 = vmatpush.msra.mxu0 %v647
    %668 = vmatpush.msra.mxu0 %v645
    %669 = vmatpush.msra.mxu0 %v643
    %670 = vmatpush.msra.mxu0 %v641
    %671 = vmatpush.msra.mxu0 %v639
    %672 = vmatpush.msra.mxu0 %v637
    %673 = vmatpush.msra.mxu0 %v635
    %674 = vmatpush.msra.mxu0 %v633
    %675 = vmatpush.msra.mxu0 %v631
    %676 = vmatpush.msra.mxu0 %v629
    %677 = vmatmul.f32.gmra.mxu0 %v57
    %v678 = vpop.f32.mrf.mxu0
    %v679 = vadd.f32 %v53, %v678
    %680 = vdwg.mxu0
    %681 = vmatpush.msra.mxu0 0.0
    %682 = vmatpush.msra.mxu0 0.0
    %683 = vmatpush.msra.mxu0 0.0
    %684 = vmatpush.msra.mxu0 %v659
    %685 = vmatpush.msra.mxu0 %v652
    %686 = vmatpush.msra.mxu0 %v650
    %687 = vmatpush.msra.mxu0 %v648
    %688 = vmatpush.msra.mxu0 %v646
    %689 = vmatpush.msra.mxu0 %v644
    %690 = vmatpush.msra.mxu0 %v642
    %691 = vmatpush.msra.mxu0 %v640
    %692 = vmatpush.msra.mxu0 %v638
    %693 = vmatpush.msra.mxu0 %v636
    %694 = vmatpush.msra.mxu0 %v634
    %695 = vmatpush.msra.mxu0 %v632
    %696 = vmatpush.msra.mxu0 %v630
    %697 = vmatmul.f32.gmra.mxu0 %v57
    %v698 = vpop.f32.mrf.mxu0
    %v699 = vadd.f32 %v53, %v698
    %700 = vdwg.mxu0
    %v701 = vmax.f32 %v679, 0.0
    %v702 = vmax.f32 %v699, 0.0
    %v703 = vld [vmem:[%s3] sm:$0xff]
    %v704 = vld [vmem:[%s3 + $0x8] sm:$0xff]
    %v705 = vld [vmem:[%s3 + $0x10] sm:$0xff]
    %v706 = vld [vmem:[%s3 + $0x18] sm:$0xff]
    %v707 = vld [vmem:[%s3 + $0x20] sm:$0xff]
    %v708 = vld [vmem:[%s3 + $0x28] sm:$0xff]
    %v709 = vld [vmem:[%s3 + $0x30] sm:$0xff]
    %v710 = vld [vmem:[%s3 + $0x38] sm:$0xff]
    %v711 = vld [vmem:[%s3 + $0x40] sm:$0xff]
    %v712 = vld [vmem:[%s3 + $0x48] sm:$0xff]
    %v713 = vld [vmem:[%s3 + $0x50] sm:$0xff]
    %v714 = vld [vmem:[%s3 + $0x58] sm:$0xff]
    %v715 = vld [vmem:[%s3 + $0x60] sm:$0xff]
    %v716 = vld [vmem:[%s3 + $0x68] sm:$0xff]
    %v717 = vld [vmem:[%s3 + $0x70] sm:$0xff]
    %v718 = vld [vmem:[%s3 + $0x78] sm:$0xff]
    %v719 = vld [vmem:[%s3 + $0x80] sm:$0xff]
    %v720 = vld [vmem:[%s3 + $0x88] sm:$0xff]
    %v722 = vsel %vm126, %v702, 0
    %724 = vmatpush.msra.mxu0 %v718
    %725 = vmatpush.msra.mxu0 %v717
    %726 = vmatpush.msra.mxu0 %v716
    %727 = vmatpush.msra.mxu0 %v715
    %728 = vmatpush.msra.mxu0 %v714
    %729 = vmatpush.msra.mxu0 %v713
    %730 = vmatpush.msra.mxu0 %v712
    %731 = vmatpush.msra.mxu0 %v711
    %732 = vmatpush.msra.mxu0 %v710
    %733 = vmatpush.msra.mxu0 %v709
    %734 = vmatpush.msra.mxu0 %v708
    %735 = vmatpush.msra.mxu0 %v707
    %736 = vmatpush.msra.mxu0 %v706
    %737 = vmatpush.msra.mxu0 %v705
    %738 = vmatpush.msra.mxu0 %v704
    %739 = vmatpush.msra.mxu0 %v703
    %740 = vmatmul.f32.gmra.mxu0 %v701
    %v741 = vpop.f32.mrf.mxu0
    %v742 = vadd.f32 0.0, %v741
    %743 = vdwg.mxu0
    %744 = vmatpush.msra.mxu0 0.0
    %745 = vmatpush.msra.mxu0 0.0
    %746 = vmatpush.msra.mxu0 0.0
    %747 = vmatpush.msra.mxu0 0.0
    %748 = vmatpush.msra.mxu0 0.0
    %749 = vmatpush.msra.mxu0 0.0
    %750 = vmatpush.msra.mxu0 0.0
    %751 = vmatpush.msra.mxu0 0.0
    %752 = vmatpush.msra.mxu0 0.0
    %753 = vmatpush.msra.mxu0 0.0
    %754 = vmatpush.msra.mxu0 0.0
    %755 = vmatpush.msra.mxu0 0.0
    %756 = vmatpush.msra.mxu0 0.0
    %757 = vmatpush.msra.mxu0 0.0
    %758 = vmatpush.msra.mxu0 %v720
    %759 = vmatpush.msra.mxu0 %v719
    %760 = vmatmul.f32.gmra.mxu0 %v722
    %v761 = vpop.f32.mrf.mxu0
    %v762 = vadd.f32 %v742, %v761
    %763 = vdwg.mxu0
    %v764 = vadd.f32 %v23, %v762
    %v765 = vld [vmem:[%s171] sm:$0xff]
    %v766 = vld [vmem:[%s171 + $0x8] sm:$0xff]
    %v767 = vld [vmem:[%s171 + $0x10] sm:$0xff]
    %v768 = vld [vmem:[%s171 + $0x18] sm:$0xff]
    %v769 = vld [vmem:[%s171 + $0x20] sm:$0xff]
    %v770 = vld [vmem:[%s171 + $0x28] sm:$0xff]
    %v771 = vld [vmem:[%s171 + $0x30] sm:$0xff]
    %v772 = vld [vmem:[%s171 + $0x38] sm:$0xff]
    %v773 = vld [vmem:[%s171 + $0x40] sm:$0xff]
    %v774 = vld [vmem:[%s171 + $0x48] sm:$0xff]
    %v775 = vld [vmem:[%s171 + $0x50] sm:$0xff]
    %v776 = vld [vmem:[%s171 + $0x58] sm:$0xff]
    %v777 = vld [vmem:[%s171 + $0x60] sm:$0xff]
    %v778 = vld [vmem:[%s171 + $0x68] sm:$0xff]
    %v779 = vld [vmem:[%s171 + $0x70] sm:$0xff]
    %v780 = vld [vmem:[%s171 + $0x78] sm:$0xff]
    %v781 = vld [vmem:[%s171 + $0x80] sm:$0xff]
    %v782 = vld [vmem:[%s171 + $0x88] sm:$0xff]
    %v784 = vrot.slane %v701, 1
    %v785 = vrot.slane %v702, 1
    %v787 = vsel %vm126, %v785, 0
    %789 = vmatpush.msra.mxu0 %v780
    %790 = vmatpush.msra.mxu0 %v779
    %791 = vmatpush.msra.mxu0 %v778
    %792 = vmatpush.msra.mxu0 %v777
    %793 = vmatpush.msra.mxu0 %v776
    %794 = vmatpush.msra.mxu0 %v775
    %795 = vmatpush.msra.mxu0 %v774
    %796 = vmatpush.msra.mxu0 %v773
    %797 = vmatpush.msra.mxu0 %v772
    %798 = vmatpush.msra.mxu0 %v771
    %799 = vmatpush.msra.mxu0 %v770
    %800 = vmatpush.msra.mxu0 %v769
    %801 = vmatpush.msra.mxu0 %v768
    %802 = vmatpush.msra.mxu0 %v767
    %803 = vmatpush.msra.mxu0 %v766
    %804 = vmatpush.msra.mxu0 %v765
    %805 = vmatmul.f32.gmra.mxu0 %v784
    %v806 = vpop.f32.mrf.mxu0
    %v807 = vadd.f32 0.0, %v806
    %808 = vdwg.mxu0
    %809 = vmatpush.msra.mxu0 0.0
    %810 = vmatpush.msra.mxu0 0.0
    %811 = vmatpush.msra.mxu0 0.0
    %812 = vmatpush.msra.mxu0 0.0
    %813 = vmatpush.msra.mxu0 0.0
    %814 = vmatpush.msra.mxu0 0.0
    %815 = vmatpush.msra.mxu0 0.0
    %816 = vmatpush.msra.mxu0 0.0
    %817 = vmatpush.msra.mxu0 0.0
    %818 = vmatpush.msra.mxu0 0.0
    %819 = vmatpush.msra.mxu0 0.0
    %820 = vmatpush.msra.mxu0 0.0
    %821 = vmatpush.msra.mxu0 0.0
    %822 = vmatpush.msra.mxu0 0.0
    %823 = vmatpush.msra.mxu0 %v782
    %824 = vmatpush.msra.mxu0 %v781
    %825 = vmatmul.f32.gmra.mxu0 %v787
    %v826 = vpop.f32.mrf.mxu0
    %v827 = vadd.f32 %v807, %v826
    %828 = vdwg.mxu0
    %v829 = vadd.f32 %v764, %v827
    %v830 = vld [vmem:[%s237] sm:$0xff]
    %v831 = vld [vmem:[%s237 + $0x8] sm:$0xff]
    %v832 = vld [vmem:[%s237 + $0x10] sm:$0xff]
    %v833 = vld [vmem:[%s237 + $0x18] sm:$0xff]
    %v834 = vld [vmem:[%s237 + $0x20] sm:$0xff]
    %v835 = vld [vmem:[%s237 + $0x28] sm:$0xff]
    %v836 = vld [vmem:[%s237 + $0x30] sm:$0xff]
    %v837 = vld [vmem:[%s237 + $0x38] sm:$0xff]
    %v838 = vld [vmem:[%s237 + $0x40] sm:$0xff]
    %v839 = vld [vmem:[%s237 + $0x48] sm:$0xff]
    %v840 = vld [vmem:[%s237 + $0x50] sm:$0xff]
    %v841 = vld [vmem:[%s237 + $0x58] sm:$0xff]
    %v842 = vld [vmem:[%s237 + $0x60] sm:$0xff]
    %v843 = vld [vmem:[%s237 + $0x68] sm:$0xff]
    %v844 = vld [vmem:[%s237 + $0x70] sm:$0xff]
    %v845 = vld [vmem:[%s237 + $0x78] sm:$0xff]
    %v846 = vld [vmem:[%s237 + $0x80] sm:$0xff]
    %v847 = vld [vmem:[%s237 + $0x88] sm:$0xff]
    %v848 = vrot.slane %v701, 2
    %v849 = vrot.slane %v702, 2
    %v851 = vsel %vm126, %v849, 0
    %853 = vmatpush.msra.mxu0 %v845
    %854 = vmatpush.msra.mxu0 %v844
    %855 = vmatpush.msra.mxu0 %v843
    %856 = vmatpush.msra.mxu0 %v842
    %857 = vmatpush.msra.mxu0 %v841
    %858 = vmatpush.msra.mxu0 %v840
    %859 = vmatpush.msra.mxu0 %v839
    %860 = vmatpush.msra.mxu0 %v838
    %861 = vmatpush.msra.mxu0 %v837
    %862 = vmatpush.msra.mxu0 %v836
    %863 = vmatpush.msra.mxu0 %v835
    %864 = vmatpush.msra.mxu0 %v834
    %865 = vmatpush.msra.mxu0 %v833
    %866 = vmatpush.msra.mxu0 %v832
    %867 = vmatpush.msra.mxu0 %v831
    %868 = vmatpush.msra.mxu0 %v830
    %869 = vmatmul.f32.gmra.mxu0 %v848
    %v870 = vpop.f32.mrf.mxu0
    %v871 = vadd.f32 0.0, %v870
    %872 = vdwg.mxu0
    %873 = vmatpush.msra.mxu0 0.0
    %874 = vmatpush.msra.mxu0 0.0
    %875 = vmatpush.msra.mxu0 0.0
    %876 = vmatpush.msra.mxu0 0.0
    %877 = vmatpush.msra.mxu0 0.0
    %878 = vmatpush.msra.mxu0 0.0
    %879 = vmatpush.msra.mxu0 0.0
    %880 = vmatpush.msra.mxu0 0.0
    %881 = vmatpush.msra.mxu0 0.0
    %882 = vmatpush.msra.mxu0 0.0
    %883 = vmatpush.msra.mxu0 0.0
    %884 = vmatpush.msra.mxu0 0.0
    %885 = vmatpush.msra.mxu0 0.0
    %886 = vmatpush.msra.mxu0 0.0
    %887 = vmatpush.msra.mxu0 %v847
    %888 = vmatpush.msra.mxu0 %v846
    %889 = vmatmul.f32.gmra.mxu0 %v851
    %v890 = vpop.f32.mrf.mxu0
    %v891 = vadd.f32 %v871, %v890
    %892 = vdwg.mxu0
    %v893 = vadd.f32 %v829, %v891
    %v894 = vld [vmem:[%s302] sm:$0xff]
    %v895 = vld [vmem:[%s302 + $0x8] sm:$0xff]
    %v896 = vld [vmem:[%s302 + $0x10] sm:$0xff]
    %v897 = vld [vmem:[%s302 + $0x18] sm:$0xff]
    %v898 = vld [vmem:[%s302 + $0x20] sm:$0xff]
    %v899 = vld [vmem:[%s302 + $0x28] sm:$0xff]
    %v900 = vld [vmem:[%s302 + $0x30] sm:$0xff]
    %v901 = vld [vmem:[%s302 + $0x38] sm:$0xff]
    %v902 = vld [vmem:[%s302 + $0x40] sm:$0xff]
    %v903 = vld [vmem:[%s302 + $0x48] sm:$0xff]
    %v904 = vld [vmem:[%s302 + $0x50] sm:$0xff]
    %v905 = vld [vmem:[%s302 + $0x58] sm:$0xff]
    %v906 = vld [vmem:[%s302 + $0x60] sm:$0xff]
    %v907 = vld [vmem:[%s302 + $0x68] sm:$0xff]
    %v908 = vld [vmem:[%s302 + $0x70] sm:$0xff]
    %v909 = vld [vmem:[%s302 + $0x78] sm:$0xff]
    %v910 = vld [vmem:[%s302 + $0x80] sm:$0xff]
    %v911 = vld [vmem:[%s302 + $0x88] sm:$0xff]
    %v912 = vrot.slane %v701, 3
    %v913 = vrot.slane %v702, 3
    %v915 = vsel %vm126, %v913, 0
    %917 = vmatpush.msra.mxu0 %v909
    %918 = vmatpush.msra.mxu0 %v908
    %919 = vmatpush.msra.mxu0 %v907
    %920 = vmatpush.msra.mxu0 %v906
    %921 = vmatpush.msra.mxu0 %v905
    %922 = vmatpush.msra.mxu0 %v904
    %923 = vmatpush.msra.mxu0 %v903
    %924 = vmatpush.msra.mxu0 %v902
    %925 = vmatpush.msra.mxu0 %v901
    %926 = vmatpush.msra.mxu0 %v900
    %927 = vmatpush.msra.mxu0 %v899
    %928 = vmatpush.msra.mxu0 %v898
    %929 = vmatpush.msra.mxu0 %v897
    %930 = vmatpush.msra.mxu0 %v896
    %931 = vmatpush.msra.mxu0 %v895
    %932 = vmatpush.msra.mxu0 %v894
    %933 = vmatmul.f32.gmra.mxu0 %v912
    %v934 = vpop.f32.mrf.mxu0
    %v935 = vadd.f32 0.0, %v934
    %936 = vdwg.mxu0
    %937 = vmatpush.msra.mxu0 0.0
    %938 = vmatpush.msra.mxu0 0.0
    %939 = vmatpush.msra.mxu0 0.0
    %940 = vmatpush.msra.mxu0 0.0
    %941 = vmatpush.msra.mxu0 0.0
    %942 = vmatpush.msra.mxu0 0.0
    %943 = vmatpush.msra.mxu0 0.0
    %944 = vmatpush.msra.mxu0 0.0
    %945 = vmatpush.msra.mxu0 0.0
    %946 = vmatpush.msra.mxu0 0.0
    %947 = vmatpush.msra.mxu0 0.0
    %948 = vmatpush.msra.mxu0 0.0
    %949 = vmatpush.msra.mxu0 0.0
    %950 = vmatpush.msra.mxu0 0.0
    %951 = vmatpush.msra.mxu0 %v911
    %952 = vmatpush.msra.mxu0 %v910
    %953 = vmatmul.f32.gmra.mxu0 %v915
    %v954 = vpop.f32.mrf.mxu0
    %v955 = vadd.f32 %v935, %v954
    %956 = vdwg.mxu0
    %v957 = vadd.f32 %v893, %v955
    %v958 = vld [vmem:[%s367] sm:$0xff]
    %v959 = vld [vmem:[%s367 + $0x8] sm:$0xff]
    %v960 = vld [vmem:[%s367 + $0x10] sm:$0xff]
    %v961 = vld [vmem:[%s367 + $0x18] sm:$0xff]
    %v962 = vld [vmem:[%s367 + $0x20] sm:$0xff]
    %v963 = vld [vmem:[%s367 + $0x28] sm:$0xff]
    %v964 = vld [vmem:[%s367 + $0x30] sm:$0xff]
    %v965 = vld [vmem:[%s367 + $0x38] sm:$0xff]
    %v966 = vld [vmem:[%s367 + $0x40] sm:$0xff]
    %v967 = vld [vmem:[%s367 + $0x48] sm:$0xff]
    %v968 = vld [vmem:[%s367 + $0x50] sm:$0xff]
    %v969 = vld [vmem:[%s367 + $0x58] sm:$0xff]
    %v970 = vld [vmem:[%s367 + $0x60] sm:$0xff]
    %v971 = vld [vmem:[%s367 + $0x68] sm:$0xff]
    %v972 = vld [vmem:[%s367 + $0x70] sm:$0xff]
    %v973 = vld [vmem:[%s367 + $0x78] sm:$0xff]
    %v974 = vld [vmem:[%s367 + $0x80] sm:$0xff]
    %v975 = vld [vmem:[%s367 + $0x88] sm:$0xff]
    %v976 = vrot.slane %v701, 4
    %v977 = vrot.slane %v702, 4
    %v979 = vsel %vm126, %v977, 0
    %981 = vmatpush.msra.mxu0 %v973
    %982 = vmatpush.msra.mxu0 %v972
    %983 = vmatpush.msra.mxu0 %v971
    %984 = vmatpush.msra.mxu0 %v970
    %985 = vmatpush.msra.mxu0 %v969
    %986 = vmatpush.msra.mxu0 %v968
    %987 = vmatpush.msra.mxu0 %v967
    %988 = vmatpush.msra.mxu0 %v966
    %989 = vmatpush.msra.mxu0 %v965
    %990 = vmatpush.msra.mxu0 %v964
    %991 = vmatpush.msra.mxu0 %v963
    %992 = vmatpush.msra.mxu0 %v962
    %993 = vmatpush.msra.mxu0 %v961
    %994 = vmatpush.msra.mxu0 %v960
    %995 = vmatpush.msra.mxu0 %v959
    %996 = vmatpush.msra.mxu0 %v958
    %997 = vmatmul.f32.gmra.mxu0 %v976
    %v998 = vpop.f32.mrf.mxu0
    %v999 = vadd.f32 0.0, %v998
    %1000 = vdwg.mxu0
    %1001 = vmatpush.msra.mxu0 0.0
    %1002 = vmatpush.msra.mxu0 0.0
    %1003 = vmatpush.msra.mxu0 0.0
    %1004 = vmatpush.msra.mxu0 0.0
    %1005 = vmatpush.msra.mxu0 0.0
    %1006 = vmatpush.msra.mxu0 0.0
    %1007 = vmatpush.msra.mxu0 0.0
    %1008 = vmatpush.msra.mxu0 0.0
    %1009 = vmatpush.msra.mxu0 0.0
    %1010 = vmatpush.msra.mxu0 0.0
    %1011 = vmatpush.msra.mxu0 0.0
    %1012 = vmatpush.msra.mxu0 0.0
    %1013 = vmatpush.msra.mxu0 0.0
    %1014 = vmatpush.msra.mxu0 0.0
    %1015 = vmatpush.msra.mxu0 %v975
    %1016 = vmatpush.msra.mxu0 %v974
    %1017 = vmatmul.f32.gmra.mxu0 %v979
    %v1018 = vpop.f32.mrf.mxu0
    %v1019 = vadd.f32 %v999, %v1018
    %1020 = vdwg.mxu0
    %v1021 = vadd.f32 %v957, %v1019
    %v1022 = vld [vmem:[%s432] sm:$0xff]
    %v1023 = vld [vmem:[%s432 + $0x8] sm:$0xff]
    %v1024 = vld [vmem:[%s432 + $0x10] sm:$0xff]
    %v1025 = vld [vmem:[%s432 + $0x18] sm:$0xff]
    %v1026 = vld [vmem:[%s432 + $0x20] sm:$0xff]
    %v1027 = vld [vmem:[%s432 + $0x28] sm:$0xff]
    %v1028 = vld [vmem:[%s432 + $0x30] sm:$0xff]
    %v1029 = vld [vmem:[%s432 + $0x38] sm:$0xff]
    %v1030 = vld [vmem:[%s432 + $0x40] sm:$0xff]
    %v1031 = vld [vmem:[%s432 + $0x48] sm:$0xff]
    %v1032 = vld [vmem:[%s432 + $0x50] sm:$0xff]
    %v1033 = vld [vmem:[%s432 + $0x58] sm:$0xff]
    %v1034 = vld [vmem:[%s432 + $0x60] sm:$0xff]
    %v1035 = vld [vmem:[%s432 + $0x68] sm:$0xff]
    %v1036 = vld [vmem:[%s432 + $0x70] sm:$0xff]
    %v1037 = vld [vmem:[%s432 + $0x78] sm:$0xff]
    %v1038 = vld [vmem:[%s432 + $0x80] sm:$0xff]
    %v1039 = vld [vmem:[%s432 + $0x88] sm:$0xff]
    %v1040 = vrot.slane %v701, 5
    %v1041 = vrot.slane %v702, 5
    %v1043 = vsel %vm126, %v1041, 0
    %1045 = vmatpush.msra.mxu0 %v1037
    %1046 = vmatpush.msra.mxu0 %v1036
    %1047 = vmatpush.msra.mxu0 %v1035
    %1048 = vmatpush.msra.mxu0 %v1034
    %1049 = vmatpush.msra.mxu0 %v1033
    %1050 = vmatpush.msra.mxu0 %v1032
    %1051 = vmatpush.msra.mxu0 %v1031
    %1052 = vmatpush.msra.mxu0 %v1030
    %1053 = vmatpush.msra.mxu0 %v1029
    %1054 = vmatpush.msra.mxu0 %v1028
    %1055 = vmatpush.msra.mxu0 %v1027
    %1056 = vmatpush.msra.mxu0 %v1026
    %1057 = vmatpush.msra.mxu0 %v1025
    %1058 = vmatpush.msra.mxu0 %v1024
    %1059 = vmatpush.msra.mxu0 %v1023
    %1060 = vmatpush.msra.mxu0 %v1022
    %1061 = vmatmul.f32.gmra.mxu0 %v1040
    %v1062 = vpop.f32.mrf.mxu0
    %v1063 = vadd.f32 0.0, %v1062
    %1064 = vdwg.mxu0
    %1065 = vmatpush.msra.mxu0 0.0
    %1066 = vmatpush.msra.mxu0 0.0
    %1067 = vmatpush.msra.mxu0 0.0
    %1068 = vmatpush.msra.mxu0 0.0
    %1069 = vmatpush.msra.mxu0 0.0
    %1070 = vmatpush.msra.mxu0 0.0
    %1071 = vmatpush.msra.mxu0 0.0
    %1072 = vmatpush.msra.mxu0 0.0
    %1073 = vmatpush.msra.mxu0 0.0
    %1074 = vmatpush.msra.mxu0 0.0
    %1075 = vmatpush.msra.mxu0 0.0
    %1076 = vmatpush.msra.mxu0 0.0
    %1077 = vmatpush.msra.mxu0 0.0
    %1078 = vmatpush.msra.mxu0 0.0
    %1079 = vmatpush.msra.mxu0 %v1039
    %1080 = vmatpush.msra.mxu0 %v1038
    %1081 = vmatmul.f32.gmra.mxu0 %v1043
    %v1082 = vpop.f32.mrf.mxu0
    %v1083 = vadd.f32 %v1063, %v1082
    %1084 = vdwg.mxu0
    %v1085 = vadd.f32 %v1021, %v1083
    %v1086 = vld [vmem:[%s497] sm:$0xff]
    %v1087 = vld [vmem:[%s497 + $0x8] sm:$0xff]
    %v1088 = vld [vmem:[%s497 + $0x10] sm:$0xff]
    %v1089 = vld [vmem:[%s497 + $0x18] sm:$0xff]
    %v1090 = vld [vmem:[%s497 + $0x20] sm:$0xff]
    %v1091 = vld [vmem:[%s497 + $0x28] sm:$0xff]
    %v1092 = vld [vmem:[%s497 + $0x30] sm:$0xff]
    %v1093 = vld [vmem:[%s497 + $0x38] sm:$0xff]
    %v1094 = vld [vmem:[%s497 + $0x40] sm:$0xff]
    %v1095 = vld [vmem:[%s497 + $0x48] sm:$0xff]
    %v1096 = vld [vmem:[%s497 + $0x50] sm:$0xff]
    %v1097 = vld [vmem:[%s497 + $0x58] sm:$0xff]
    %v1098 = vld [vmem:[%s497 + $0x60] sm:$0xff]
    %v1099 = vld [vmem:[%s497 + $0x68] sm:$0xff]
    %v1100 = vld [vmem:[%s497 + $0x70] sm:$0xff]
    %v1101 = vld [vmem:[%s497 + $0x78] sm:$0xff]
    %v1102 = vld [vmem:[%s497 + $0x80] sm:$0xff]
    %v1103 = vld [vmem:[%s497 + $0x88] sm:$0xff]
    %v1104 = vrot.slane %v701, 6
    %v1105 = vrot.slane %v702, 6
    %v1107 = vsel %vm126, %v1105, 0
    %1109 = vmatpush.msra.mxu0 %v1101
    %1110 = vmatpush.msra.mxu0 %v1100
    %1111 = vmatpush.msra.mxu0 %v1099
    %1112 = vmatpush.msra.mxu0 %v1098
    %1113 = vmatpush.msra.mxu0 %v1097
    %1114 = vmatpush.msra.mxu0 %v1096
    %1115 = vmatpush.msra.mxu0 %v1095
    %1116 = vmatpush.msra.mxu0 %v1094
    %1117 = vmatpush.msra.mxu0 %v1093
    %1118 = vmatpush.msra.mxu0 %v1092
    %1119 = vmatpush.msra.mxu0 %v1091
    %1120 = vmatpush.msra.mxu0 %v1090
    %1121 = vmatpush.msra.mxu0 %v1089
    %1122 = vmatpush.msra.mxu0 %v1088
    %1123 = vmatpush.msra.mxu0 %v1087
    %1124 = vmatpush.msra.mxu0 %v1086
    %1125 = vmatmul.f32.gmra.mxu0 %v1104
    %v1126 = vpop.f32.mrf.mxu0
    %v1127 = vadd.f32 0.0, %v1126
    %1128 = vdwg.mxu0
    %1129 = vmatpush.msra.mxu0 0.0
    %1130 = vmatpush.msra.mxu0 0.0
    %1131 = vmatpush.msra.mxu0 0.0
    %1132 = vmatpush.msra.mxu0 0.0
    %1133 = vmatpush.msra.mxu0 0.0
    %1134 = vmatpush.msra.mxu0 0.0
    %1135 = vmatpush.msra.mxu0 0.0
    %1136 = vmatpush.msra.mxu0 0.0
    %1137 = vmatpush.msra.mxu0 0.0
    %1138 = vmatpush.msra.mxu0 0.0
    %1139 = vmatpush.msra.mxu0 0.0
    %1140 = vmatpush.msra.mxu0 0.0
    %1141 = vmatpush.msra.mxu0 0.0
    %1142 = vmatpush.msra.mxu0 0.0
    %1143 = vmatpush.msra.mxu0 %v1103
    %1144 = vmatpush.msra.mxu0 %v1102
    %1145 = vmatmul.f32.gmra.mxu0 %v1107
    %v1146 = vpop.f32.mrf.mxu0
    %v1147 = vadd.f32 %v1127, %v1146
    %1148 = vdwg.mxu0
    %v1149 = vadd.f32 %v1085, %v1147
    %v1150 = vld [vmem:[%s562] sm:$0xff]
    %v1151 = vld [vmem:[%s562 + $0x8] sm:$0xff]
    %v1152 = vld [vmem:[%s562 + $0x10] sm:$0xff]
    %v1153 = vld [vmem:[%s562 + $0x18] sm:$0xff]
    %v1154 = vld [vmem:[%s562 + $0x20] sm:$0xff]
    %v1155 = vld [vmem:[%s562 + $0x28] sm:$0xff]
    %v1156 = vld [vmem:[%s562 + $0x30] sm:$0xff]
    %v1157 = vld [vmem:[%s562 + $0x38] sm:$0xff]
    %v1158 = vld [vmem:[%s562 + $0x40] sm:$0xff]
    %v1159 = vld [vmem:[%s562 + $0x48] sm:$0xff]
    %v1160 = vld [vmem:[%s562 + $0x50] sm:$0xff]
    %v1161 = vld [vmem:[%s562 + $0x58] sm:$0xff]
    %v1162 = vld [vmem:[%s562 + $0x60] sm:$0xff]
    %v1163 = vld [vmem:[%s562 + $0x68] sm:$0xff]
    %v1164 = vld [vmem:[%s562 + $0x70] sm:$0xff]
    %v1165 = vld [vmem:[%s562 + $0x78] sm:$0xff]
    %v1166 = vld [vmem:[%s562 + $0x80] sm:$0xff]
    %v1167 = vld [vmem:[%s562 + $0x88] sm:$0xff]
    %v1168 = vrot.slane %v701, 7
    %v1169 = vrot.slane %v702, 7
    %v1171 = vsel %vm126, %v1169, 0
    %1173 = vmatpush.msra.mxu0 %v1165
    %1174 = vmatpush.msra.mxu0 %v1164
    %1175 = vmatpush.msra.mxu0 %v1163
    %1176 = vmatpush.msra.mxu0 %v1162
    %1177 = vmatpush.msra.mxu0 %v1161
    %1178 = vmatpush.msra.mxu0 %v1160
    %1179 = vmatpush.msra.mxu0 %v1159
    %1180 = vmatpush.msra.mxu0 %v1158
    %1181 = vmatpush.msra.mxu0 %v1157
    %1182 = vmatpush.msra.mxu0 %v1156
    %1183 = vmatpush.msra.mxu0 %v1155
    %1184 = vmatpush.msra.mxu0 %v1154
    %1185 = vmatpush.msra.mxu0 %v1153
    %1186 = vmatpush.msra.mxu0 %v1152
    %1187 = vmatpush.msra.mxu0 %v1151
    %1188 = vmatpush.msra.mxu0 %v1150
    %1189 = vmatmul.f32.gmra.mxu0 %v1168
    %v1190 = vpop.f32.mrf.mxu0
    %v1191 = vadd.f32 0.0, %v1190
    %1192 = vdwg.mxu0
    %1193 = vmatpush.msra.mxu0 0.0
    %1194 = vmatpush.msra.mxu0 0.0
    %1195 = vmatpush.msra.mxu0 0.0
    %1196 = vmatpush.msra.mxu0 0.0
    %1197 = vmatpush.msra.mxu0 0.0
    %1198 = vmatpush.msra.mxu0 0.0
    %1199 = vmatpush.msra.mxu0 0.0
    %1200 = vmatpush.msra.mxu0 0.0
    %1201 = vmatpush.msra.mxu0 0.0
    %1202 = vmatpush.msra.mxu0 0.0
    %1203 = vmatpush.msra.mxu0 0.0
    %1204 = vmatpush.msra.mxu0 0.0
    %1205 = vmatpush.msra.mxu0 0.0
    %1206 = vmatpush.msra.mxu0 0.0
    %1207 = vmatpush.msra.mxu0 %v1167
    %1208 = vmatpush.msra.mxu0 %v1166
    %1209 = vmatmul.f32.gmra.mxu0 %v1171
    %v1210 = vpop.f32.mrf.mxu0
    %v1211 = vadd.f32 %v1191, %v1210
    %1212 = vdwg.mxu0
    %v1213 = vadd.f32 %v1149, %v1211
    %s1214 = scalar_lea.vmem [#allocation2], 1
    %1215 = vst [vmem:[%s1214] sm:$0x1] %v1213
    // Predicated region
    $region22: #{simple_convnet_forward.1} parent=1 // pred_check
      _
    $region23: #{simple_convnet_forward.1} parent=1 // pred_check_branch
      %1217 = sbr.rel (0) target = $region25
    $region24: #{simple_convnet_forward.1} parent=1 // pred_region
      %1219 = vsyncadd [#allocation3], 0
      %s1220 = sshll.u32 [#allocation2], 4
      %s1221 = int_to_ptr.vmem [resolvable:$true] %s1220
      %s1222 = sshll.u32 %s5, 4
      %s1223 = int_to_ptr.hbm [resolvable:$true] %s1222
      %1228 = dma.vmem_to_hbm [thread:$0]  %s1221, 32, %s1223, [#allocation3], 16, 16, 1
    $region25: #{simple_convnet_forward.1} parent=1 // pred_fallthru
      _
    // Predicated region
    $region26: #{simple_convnet_forward.1} parent=1 // pred_check
      _
    $region27: #{simple_convnet_forward.1} parent=1 // pred_check_branch
      %1230 = sbr.rel (0) target = $region29
    $region28: #{simple_convnet_forward.1} parent=1 // pred_region
      %1232 = dma.done [#allocation3], 32
    $region29: #{simple_convnet_forward.1} parent=1 // pred_fallthru
      _
    %1233 = vsyncpa [#allocation3], 1

</llo_original>
